<compile_context>
chip_gen: v5e
topology: v5e:2x2
jax: 0.10.0
libtpu: 0.0.40
codegen_flags: <defaults>
</compile_context>

<pallas_src>
import functools

import jax
import jax.numpy as jnp
from jax.experimental import pallas as pl
from jax.experimental.pallas import tpu as pltpu

HIDDEN = 512


def _round_up(x, m):
    return ((x + m - 1) // m) * m


def _cdiv(a, b):
    return (a + b - 1) // b


def discriminator_kernel(out_dim,
                         x_ref,
                         w1_ref, b1_ref,
                         w2_ref, b2_ref,
                         w3_ref, b3_ref,
                         w4_ref, b4_ref,
                         out_ref):
    # fc1 + tanh   (x already bf16 from the wrapper; f32 accumulation on MXU)
    h = jnp.dot(x_ref[...], w1_ref[...], preferred_element_type=jnp.float32)
    h = jnp.tanh(h + b1_ref[...])
    # fc2 + tanh
    h = jnp.dot(h.astype(jnp.bfloat16), w2_ref[...],
                preferred_element_type=jnp.float32)
    h = jnp.tanh(h + b2_ref[...])
    # fc3 + tanh
    h = jnp.dot(h.astype(jnp.bfloat16), w3_ref[...],
                preferred_element_type=jnp.float32)
    h = jnp.tanh(h + b3_ref[...])
    # out_layer + sigmoid: matmul against the 128-lane padded w4 (same MXU
    # shape as a lane-aligned tile), then slice to the real output width so
    # only out_dim lanes are stored / written back to HBM.
    h = jnp.dot(h.astype(jnp.bfloat16), w4_ref[...],
                preferred_element_type=jnp.float32)
    logits = (h + b4_ref[...])[:, :out_dim]
    out_ref[...] = jax.nn.sigmoid(logits).astype(out_ref.dtype)


def _choose_batch_tiling(B, tm_max):
    """Pick (tm, b_pad, n_tiles): tm multiple of 8 and <= tm_max, batch padding
    kept below one row-group, and >= 2 grid steps whenever B >= 16 so both
    v7x TensorCores get work under dimension_semantics=("parallel",)."""
    b8 = _round_up(B, 8)
    n_tiles = _cdiv(b8, tm_max)
    if b8 >= 16:
        n_tiles = max(n_tiles, 2)
    tm = _round_up(_cdiv(b8, n_tiles), 8)
    n_tiles = _cdiv(b8, tm)
    if b8 >= 16:
        n_tiles = max(n_tiles, 2)
    return tm, tm * n_tiles, n_tiles


@functools.partial(jax.jit, static_argnames=("tm_max",))
def discriminator_forward(x, params, *, tm_max=1024):
    """x: (B, input_dim) float32. params: [(w_i, b_i)] with w: (in, out), b: (1, out)."""
    (w1, b1), (w2, b2), (w3, b3), (w4, b4) = params
    B, in_dim = x.shape
    hidden = w1.shape[1]
    out_dim = w4.shape[1]
    out_pad = _round_up(out_dim, 128)  # lane-aligned layer-4 matmul width

    tm, b_pad, n_tiles = _choose_batch_tiling(B, tm_max)

    # Stream x in bf16 at its native contraction width (no f32 / K=128 pad).
    x_b = jnp.pad(x.astype(jnp.bfloat16), ((0, b_pad - B), (0, 0)))

    # Weights as bf16 (fetched once, VMEM resident). Only w4/b4 are lane-padded.
    w1_b = w1.astype(jnp.bfloat16)
    w2_b = w2.astype(jnp.bfloat16)
    w3_b = w3.astype(jnp.bfloat16)
    w4_p = jnp.zeros((hidden, out_pad), jnp.bfloat16).at[:, :out_dim].set(
        w4.astype(jnp.bfloat16))
    b4_p = jnp.zeros((1, out_pad), jnp.float32).at[:, :out_dim].set(b4)

    const = lambda i: (0, 0)  # grid-invariant operands: same block every step

    out = pl.pallas_call(
        functools.partial(discriminator_kernel, out_dim),
        out_shape=jax.ShapeDtypeStruct((b_pad, out_dim), jnp.float32),
        grid_spec=pltpu.PrefetchScalarGridSpec(
            num_scalar_prefetch=0,
            grid=(n_tiles,),
            in_specs=[
                pl.BlockSpec((tm, in_dim), lambda i: (i, 0)),   # x tile (bf16)
                pl.BlockSpec((in_dim, hidden), const),          # w1
                pl.BlockSpec((1, hidden), const),               # b1
                pl.BlockSpec((hidden, hidden), const),          # w2
                pl.BlockSpec((1, hidden), const),               # b2
                pl.BlockSpec((hidden, hidden), const),          # w3
                pl.BlockSpec((1, hidden), const),               # b3
                pl.BlockSpec((hidden, out_pad), const),         # w4 (lane padded)
                pl.BlockSpec((1, out_pad), const),              # b4 (lane padded)
            ],
            out_specs=pl.BlockSpec((tm, out_dim), lambda i: (i, 0)),
        ),
        compiler_params=pltpu.CompilerParams(
            dimension_semantics=("parallel",),    # megacore sharding on v7x
            vmem_limit_bytes=32 * 1024 * 1024,    # v5e default scoped limit is 16 MiB
        ),
    )(x_b, w1_b, b1, w2_b, b2, w3_b, b3, w4_p, b4_p)

    # Drop batch padding; output width is already exact.
    return out[:B]


def init_params(key, input_dim, output_dim):
    """Deterministic, PyTorch-Linear-style init: U(-1/sqrt(fan_in), 1/sqrt(fan_in))."""
    dims = [(input_dim, HIDDEN), (HIDDEN, HIDDEN), (HIDDEN, HIDDEN), (HIDDEN, output_dim)]
    params = []
    for (fan_in, fan_out) in dims:
        key, kw, kb = jax.random.split(key, 3)
        bound = 1.0 / jnp.sqrt(jnp.float32(fan_in))
        w = jax.random.uniform(kw, (fan_in, fan_out), jnp.float32, -bound, bound)
        b = jax.random.uniform(kb, (1, fan_out), jnp.float32, -bound, bound)
        params.append((w, b))
    return params


def reference_forward(x, params):
    h = x
    for i, (w, b) in enumerate(params):
        h = h @ w + b
        h = jnp.tanh(h) if i < 3 else jax.nn.sigmoid(h)
    return h


if __name__ == "__main__":
    key = jax.random.PRNGKey(0)
    input_dim, output_dim = 64, 1
    k_x, k_p, k_x2 = jax.random.split(key, 3)
    params = init_params(k_p, input_dim, output_dim)

    # Small batch (single grid step).
    B = 8
    x = jax.random.normal(k_x, (B, input_dim), jnp.float32)
    out = jax.block_until_ready(discriminator_forward(x, params))
    ref = reference_forward(x, params)
    assert out.shape == (B, output_dim), out.shape
    max_err = float(jnp.max(jnp.abs(out - ref)))
    # bf16 matmul operands with f32 accumulation -> loosened tolerance vs f32 ref.
    assert max_err < 2e-2, max_err

    # Non-multiple-of-tile batch (exercises batch padding + the >=2-step grid
    # path used for v7x megacore sharding).
    B2 = 40
    x2 = jax.random.normal(k_x2, (B2, input_dim), jnp.float32)
    out2 = jax.block_until_ready(discriminator_forward(x2, params))
    ref2 = reference_forward(x2, params)
    assert out2.shape == (B2, output_dim), out2.shape
    max_err2 = float(jnp.max(jnp.abs(out2 - ref2)))
    assert max_err2 < 2e-2, max_err2

    print("KERNEL_OK")
</pallas_src>

<mosaic_0001>
module attributes {stable_mosaic.version = 11 : i64} {
  func.func @discriminator_kernel(%arg0: i32, %arg1: memref<8x64xbf16, #tpu.memory_space<vmem>>, %arg2: memref<64x512xbf16, #tpu.memory_space<vmem>>, %arg3: memref<1x512xf32, #tpu.memory_space<vmem>>, %arg4: memref<512x512xbf16, #tpu.memory_space<vmem>>, %arg5: memref<1x512xf32, #tpu.memory_space<vmem>>, %arg6: memref<512x512xbf16, #tpu.memory_space<vmem>>, %arg7: memref<1x512xf32, #tpu.memory_space<vmem>>, %arg8: memref<512x128xbf16, #tpu.memory_space<vmem>>, %arg9: memref<1x128xf32, #tpu.memory_space<vmem>>, %arg10: memref<8x1xf32, #tpu.memory_space<vmem>>) attributes {dimension_semantics = [#tpu.dimension_semantics<parallel>], iteration_bounds = array<i64: 1>, scalar_prefetch = 0 : i64, scratch_operands = 0 : i64, tpu.core_type = #tpu.core_type<tc>, window_params = [{transform_indices = @transform_0, window_bounds = array<i64: 8, 64>}, {pipeline_mode = #tpu.pipeline_mode<synchronous>, transform_indices = @transform_1, window_bounds = array<i64: 64, 512>}, {pipeline_mode = #tpu.pipeline_mode<synchronous>, transform_indices = @transform_2, window_bounds = array<i64: 1, 512>}, {pipeline_mode = #tpu.pipeline_mode<synchronous>, transform_indices = @transform_3, window_bounds = array<i64: 512, 512>}, {pipeline_mode = #tpu.pipeline_mode<synchronous>, transform_indices = @transform_4, window_bounds = array<i64: 1, 512>}, {pipeline_mode = #tpu.pipeline_mode<synchronous>, transform_indices = @transform_5, window_bounds = array<i64: 512, 512>}, {pipeline_mode = #tpu.pipeline_mode<synchronous>, transform_indices = @transform_6, window_bounds = array<i64: 1, 512>}, {pipeline_mode = #tpu.pipeline_mode<synchronous>, transform_indices = @transform_7, window_bounds = array<i64: 512, 128>}, {pipeline_mode = #tpu.pipeline_mode<synchronous>, transform_indices = @transform_8, window_bounds = array<i64: 1, 128>}, {transform_indices = @transform_9, window_bounds = array<i64: 8, 1>}]} {
    %c0 = arith.constant 0 : index
    %c0_0 = arith.constant 0 : index
    %0 = vector.load %arg1[%c0, %c0_0] : memref<8x64xbf16, #tpu.memory_space<vmem>>, vector<8x64xbf16>
    %c0_1 = arith.constant 0 : index
    %c0_2 = arith.constant 0 : index
    %1 = vector.load %arg2[%c0_1, %c0_2] : memref<64x512xbf16, #tpu.memory_space<vmem>>, vector<64x512xbf16>
    %cst = arith.constant dense<0.000000e+00> : vector<8x512xf32>
    %2 = tpu.matmul %0, %1, %cst {dimension_numbers = #tpu.dot_dimension_numbers<[1], [0], [0], [1], [0, 0, 1, 1], [], []>} : vector<8x64xbf16>, vector<64x512xbf16>, vector<8x512xf32> -> vector<8x512xf32>
    %c0_3 = arith.constant 0 : index
    %c0_4 = arith.constant 0 : index
    %3 = vector.load %arg3[%c0_3, %c0_4] : memref<1x512xf32, #tpu.memory_space<vmem>>, vector<1x512xf32>
    %4 = vector.broadcast %3 : vector<1x512xf32> to vector<8x512xf32>
    %5 = arith.addf %2, %4 : vector<8x512xf32>
    %6 = math.tanh %5 : vector<8x512xf32>
    %7 = arith.truncf %6 : vector<8x512xf32> to vector<8x512xbf16>
    %c0_5 = arith.constant 0 : index
    %c0_6 = arith.constant 0 : index
    %8 = vector.load %arg4[%c0_5, %c0_6] : memref<512x512xbf16, #tpu.memory_space<vmem>>, vector<512x512xbf16>
    %cst_7 = arith.constant dense<0.000000e+00> : vector<8x512xf32>
    %9 = tpu.matmul %7, %8, %cst_7 {dimension_numbers = #tpu.dot_dimension_numbers<[1], [0], [0], [1], [0, 0, 1, 1], [], []>} : vector<8x512xbf16>, vector<512x512xbf16>, vector<8x512xf32> -> vector<8x512xf32>
    %c0_8 = arith.constant 0 : index
    %c0_9 = arith.constant 0 : index
    %10 = vector.load %arg5[%c0_8, %c0_9] : memref<1x512xf32, #tpu.memory_space<vmem>>, vector<1x512xf32>
    %11 = vector.broadcast %10 : vector<1x512xf32> to vector<8x512xf32>
    %12 = arith.addf %9, %11 : vector<8x512xf32>
    %13 = math.tanh %12 : vector<8x512xf32>
    %14 = arith.truncf %13 : vector<8x512xf32> to vector<8x512xbf16>
    %c0_10 = arith.constant 0 : index
    %c0_11 = arith.constant 0 : index
    %15 = vector.load %arg6[%c0_10, %c0_11] : memref<512x512xbf16, #tpu.memory_space<vmem>>, vector<512x512xbf16>
    %cst_12 = arith.constant dense<0.000000e+00> : vector<8x512xf32>
    %16 = tpu.matmul %14, %15, %cst_12 {dimension_numbers = #tpu.dot_dimension_numbers<[1], [0], [0], [1], [0, 0, 1, 1], [], []>} : vector<8x512xbf16>, vector<512x512xbf16>, vector<8x512xf32> -> vector<8x512xf32>
    %c0_13 = arith.constant 0 : index
    %c0_14 = arith.constant 0 : index
    %17 = vector.load %arg7[%c0_13, %c0_14] : memref<1x512xf32, #tpu.memory_space<vmem>>, vector<1x512xf32>
    %18 = vector.broadcast %17 : vector<1x512xf32> to vector<8x512xf32>
    %19 = arith.addf %16, %18 : vector<8x512xf32>
    %20 = math.tanh %19 : vector<8x512xf32>
    %21 = arith.truncf %20 : vector<8x512xf32> to vector<8x512xbf16>
    %c0_15 = arith.constant 0 : index
    %c0_16 = arith.constant 0 : index
    %22 = vector.load %arg8[%c0_15, %c0_16] : memref<512x128xbf16, #tpu.memory_space<vmem>>, vector<512x128xbf16>
    %cst_17 = arith.constant dense<0.000000e+00> : vector<8x128xf32>
    %23 = tpu.matmul %21, %22, %cst_17 {dimension_numbers = #tpu.dot_dimension_numbers<[1], [0], [0], [1], [0, 0, 1, 1], [], []>} : vector<8x512xbf16>, vector<512x128xbf16>, vector<8x128xf32> -> vector<8x128xf32>
    %c0_18 = arith.constant 0 : index
    %c0_19 = arith.constant 0 : index
    %24 = vector.load %arg9[%c0_18, %c0_19] : memref<1x128xf32, #tpu.memory_space<vmem>>, vector<1x128xf32>
    %25 = vector.broadcast %24 : vector<1x128xf32> to vector<8x128xf32>
    %26 = arith.addf %23, %25 : vector<8x128xf32>
    %27 = vector.extract_strided_slice %26 {offsets = [0, 0], sizes = [8, 1], strides = [1, 1]} : vector<8x128xf32> to vector<8x1xf32>
    %28 = arith.negf %27 : vector<8x1xf32>
    %29 = math.exp %28 : vector<8x1xf32>
    %cst_20 = arith.constant 1.000000e+00 : f32
    %30 = vector.broadcast %cst_20 : f32 to vector<8x1xf32>
    %31 = arith.addf %30, %29 : vector<8x1xf32>
    %32 = arith.divf %30, %31 : vector<8x1xf32>
    %c0_21 = arith.constant 0 : index
    %c0_22 = arith.constant 0 : index
    %33 = vector.load %arg10[%c0_21, %c0_22] : memref<8x1xf32, #tpu.memory_space<vmem>>, vector<8x1xf32>
    tpu.vector_store %arg10[%c0_21, %c0_22], %32 {strides = array<i32>} : memref<8x1xf32, #tpu.memory_space<vmem>>, vector<8x1xf32>,
    return
  }
  func.func @transform_0(%arg0: i32) -> (i32, i32) {
    %c0_i32 = arith.constant 0 : i32
    %c0_i32_0 = arith.constant 0 : i32
    return %arg0, %c0_i32 : i32, i32
  }
  func.func @transform_1(%arg0: i32) -> (i32, i32) {
    %c0_i32 = arith.constant 0 : i32
    %c0_i32_0 = arith.constant 0 : i32
    %c0_i32_1 = arith.constant 0 : i32
    return %c0_i32, %c0_i32_0 : i32, i32
  }
  func.func @transform_2(%arg0: i32) -> (i32, i32) {
    %c0_i32 = arith.constant 0 : i32
    %c0_i32_0 = arith.constant 0 : i32
    %c0_i32_1 = arith.constant 0 : i32
    return %c0_i32, %c0_i32_0 : i32, i32
  }
  func.func @transform_3(%arg0: i32) -> (i32, i32) {
    %c0_i32 = arith.constant 0 : i32
    %c0_i32_0 = arith.constant 0 : i32
    %c0_i32_1 = arith.constant 0 : i32
    return %c0_i32, %c0_i32_0 : i32, i32
  }
  func.func @transform_4(%arg0: i32) -> (i32, i32) {
    %c0_i32 = arith.constant 0 : i32
    %c0_i32_0 = arith.constant 0 : i32
    %c0_i32_1 = arith.constant 0 : i32
    return %c0_i32, %c0_i32_0 : i32, i32
  }
  func.func @transform_5(%arg0: i32) -> (i32, i32) {
    %c0_i32 = arith.constant 0 : i32
    %c0_i32_0 = arith.constant 0 : i32
    %c0_i32_1 = arith.constant 0 : i32
    return %c0_i32, %c0_i32_0 : i32, i32
  }
  func.func @transform_6(%arg0: i32) -> (i32, i32) {
    %c0_i32 = arith.constant 0 : i32
    %c0_i32_0 = arith.constant 0 : i32
    %c0_i32_1 = arith.constant 0 : i32
    return %c0_i32, %c0_i32_0 : i32, i32
  }
  func.func @transform_7(%arg0: i32) -> (i32, i32) {
    %c0_i32 = arith.constant 0 : i32
    %c0_i32_0 = arith.constant 0 : i32
    %c0_i32_1 = arith.constant 0 : i32
    return %c0_i32, %c0_i32_0 : i32, i32
  }
  func.func @transform_8(%arg0: i32) -> (i32, i32) {
    %c0_i32 = arith.constant 0 : i32
    %c0_i32_0 = arith.constant 0 : i32
    %c0_i32_1 = arith.constant 0 : i32
    return %c0_i32, %c0_i32_0 : i32, i32
  }
  func.func @transform_9(%arg0: i32) -> (i32, i32) {
    %c0_i32 = arith.constant 0 : i32
    %c0_i32_0 = arith.constant 0 : i32
    return %arg0, %c0_i32 : i32, i32
  }
}

</mosaic_0001>

<llo_original>
// kernel: discriminator_forward.1
$region0: #{discriminator_forward.1}
  #allocation0 [shape = 'u32[]', space=smem, size = 0x4, offset = 0x4, fixed_abs, tag = 'smem constant byte address 0x4 - core index']
  #allocation1 [shape = 'u32[72,128]{1,0:T(1,128)}', space=vmem, size = 0x9000, scoped, tag = 'internal scratch']
  %s0 = inlined_call_operand.vmem [shape: bf16[8,64], index: 0, kind: input, shape index: {}]
  %s1 = inlined_call_operand.vmem [shape: bf16[64,512], index: 1, kind: input, shape index: {}]
  %s2 = inlined_call_operand.vmem [shape: f32[1,512], index: 2, kind: input, shape index: {}]
  %s3 = inlined_call_operand.vmem [shape: bf16[512,512], index: 3, kind: input, shape index: {}]
  %s4 = inlined_call_operand.vmem [shape: f32[1,512], index: 4, kind: input, shape index: {}]
  %s5 = inlined_call_operand.vmem [shape: bf16[512,512], index: 5, kind: input, shape index: {}]
  %s6 = inlined_call_operand.vmem [shape: f32[1,512], index: 6, kind: input, shape index: {}]
  %s7 = inlined_call_operand.vmem [shape: bf16[512,128], index: 7, kind: input, shape index: {}]
  %s8 = inlined_call_operand.vmem [shape: f32[1,128], index: 8, kind: input, shape index: {}]
  %s9 = inlined_call_operand.vmem [shape: f32[8,1], index: 9, kind: output, shape index: {}]
  %s10 = sld [smem:[#allocation0]]
  $region46: #{discriminator_forward.1} parent=0
    _
  %s12 = ssub.s32 1, %s10
  %s13 = scalar_select 0, %s12, %s10
  // Predicated region
  $region2: #{discriminator_forward.1} parent=0 // pred_check
    _
  $region3: #{discriminator_forward.1} parent=0 // pred_check_branch
    %15 = sbr.rel (0) target = $region5
  $region4: #{discriminator_forward.1} parent=0 // pred_region
    _
  $region5: #{discriminator_forward.1} parent=0 // pred_fallthru
    _
  // Predicated region
  $region6: #{discriminator_forward.1} parent=0 // pred_check
    _
  $region7: #{discriminator_forward.1} parent=0 // pred_check_branch
    %17 = sbr.rel (0) target = $region9
  $region8: #{discriminator_forward.1} parent=0 // pred_region
    _
  $region9: #{discriminator_forward.1} parent=0 // pred_fallthru
    _
  // Predicated region
  $region10: #{discriminator_forward.1} parent=0 // pred_check
    _
  $region11: #{discriminator_forward.1} parent=0 // pred_check_branch
    %19 = sbr.rel (0) target = $region13
  $region12: #{discriminator_forward.1} parent=0 // pred_region
    _
  $region13: #{discriminator_forward.1} parent=0 // pred_fallthru
    _
  // Predicated region
  $region14: #{discriminator_forward.1} parent=0 // pred_check
    _
  $region15: #{discriminator_forward.1} parent=0 // pred_check_branch
    %21 = sbr.rel (0) target = $region17
  $region16: #{discriminator_forward.1} parent=0 // pred_region
    _
  $region17: #{discriminator_forward.1} parent=0 // pred_fallthru
    _
  // Predicated region
  $region18: #{discriminator_forward.1} parent=0 // pred_check
    _
  $region19: #{discriminator_forward.1} parent=0 // pred_check_branch
    %23 = sbr.rel (0) target = $region21
  $region20: #{discriminator_forward.1} parent=0 // pred_region
    _
  $region21: #{discriminator_forward.1} parent=0 // pred_fallthru
    _
  // Predicated region
  $region22: #{discriminator_forward.1} parent=0 // pred_check
    _
  $region23: #{discriminator_forward.1} parent=0 // pred_check_branch
    %25 = sbr.rel (0) target = $region25
  $region24: #{discriminator_forward.1} parent=0 // pred_region
    _
  $region25: #{discriminator_forward.1} parent=0 // pred_fallthru
    _
  // Predicated region
  $region26: #{discriminator_forward.1} parent=0 // pred_check
    _
  $region27: #{discriminator_forward.1} parent=0 // pred_check_branch
    %27 = sbr.rel (0) target = $region29
  $region28: #{discriminator_forward.1} parent=0 // pred_region
    _
  $region29: #{discriminator_forward.1} parent=0 // pred_fallthru
    _
  // Predicated region
  $region30: #{discriminator_forward.1} parent=0 // pred_check
    _
  $region31: #{discriminator_forward.1} parent=0 // pred_check_branch
    %29 = sbr.rel (0) target = $region33
  $region32: #{discriminator_forward.1} parent=0 // pred_region
    _
  $region33: #{discriminator_forward.1} parent=0 // pred_fallthru
    _
  // Predicated region
  $region34: #{discriminator_forward.1} parent=0 // pred_check
    _
  $region35: #{discriminator_forward.1} parent=0 // pred_check_branch
    %31 = sbr.rel (0) target = $region37
  $region36: #{discriminator_forward.1} parent=0 // pred_region
    _
  $region37: #{discriminator_forward.1} parent=0 // pred_fallthru
    _
  %v33 = vld [vmem:[%s0] sm:$0xf]
  %v34 = vld [vmem:[%s1] sm:$0xff]
  %v35 = vld [vmem:[%s1 + $0x8] sm:$0xff]
  %v36 = vld [vmem:[%s1 + $0x10] sm:$0xff]
  %v37 = vld [vmem:[%s1 + $0x18] sm:$0xff]
  %v38 = vld [vmem:[%s1 + $0x20] sm:$0xff]
  %v39 = vld [vmem:[%s1 + $0x28] sm:$0xff]
  %v40 = vld [vmem:[%s1 + $0x30] sm:$0xff]
  %v41 = vld [vmem:[%s1 + $0x38] sm:$0xff]
  %v42 = vld [vmem:[%s1 + $0x40] sm:$0xff]
  %v43 = vld [vmem:[%s1 + $0x48] sm:$0xff]
  %v44 = vld [vmem:[%s1 + $0x50] sm:$0xff]
  %v45 = vld [vmem:[%s1 + $0x58] sm:$0xff]
  %v46 = vld [vmem:[%s1 + $0x60] sm:$0xff]
  %v47 = vld [vmem:[%s1 + $0x68] sm:$0xff]
  %v48 = vld [vmem:[%s1 + $0x70] sm:$0xff]
  %v49 = vld [vmem:[%s1 + $0x78] sm:$0xff]
  %v50 = vld [vmem:[%s2] sm:$0xf]
  %v52 = vperm.slane %v50, 0
  %v53 = vperm.slane %v50, 1
  %v54 = vperm.slane %v50, 2
  %v55 = vperm.slane %v50, 3
  %v76 = vunpack.c.l.b16 %v34
  %v77 = vunpack.c.h.b16 %v34
  %v78 = vunpack.c.l.b16 %v35
  %v79 = vunpack.c.h.b16 %v35
  %v80 = vunpack.c.l.b16 %v36
  %v81 = vunpack.c.h.b16 %v36
  %v82 = vunpack.c.l.b16 %v37
  %v83 = vunpack.c.h.b16 %v37
  %v84 = vunpack.c.l.b16 %v38
  %v85 = vunpack.c.h.b16 %v38
  %v86 = vunpack.c.l.b16 %v39
  %v87 = vunpack.c.h.b16 %v39
  %v88 = vunpack.c.l.b16 %v40
  %v89 = vunpack.c.h.b16 %v40
  %v90 = vunpack.c.l.b16 %v41
  %v91 = vunpack.c.h.b16 %v41
  %v92 = vunpack.c.l.b16 %v42
  %v93 = vunpack.c.h.b16 %v42
  %v94 = vunpack.c.l.b16 %v43
  %v95 = vunpack.c.h.b16 %v43
  %v96 = vunpack.c.l.b16 %v44
  %v97 = vunpack.c.h.b16 %v44
  %v98 = vunpack.c.l.b16 %v45
  %v99 = vunpack.c.h.b16 %v45
  %v100 = vunpack.c.l.b16 %v46
  %v101 = vunpack.c.h.b16 %v46
  %v102 = vunpack.c.l.b16 %v47
  %v103 = vunpack.c.h.b16 %v47
  %v104 = vunpack.c.l.b16 %v48
  %v105 = vunpack.c.h.b16 %v48
  %v106 = vunpack.c.l.b16 %v49
  %v107 = vunpack.c.h.b16 %v49
  %v108 = vpack.c.b16 %v80, %v76
  %v109 = vpack.c.b16 %v81, %v77
  %v110 = vpack.c.b16 %v82, %v78
  %v111 = vpack.c.b16 %v83, %v79
  %v112 = vpack.c.b16 %v88, %v84
  %v113 = vpack.c.b16 %v89, %v85
  %v114 = vpack.c.b16 %v90, %v86
  %v115 = vpack.c.b16 %v91, %v87
  %v116 = vpack.c.b16 %v96, %v92
  %v117 = vpack.c.b16 %v97, %v93
  %v118 = vpack.c.b16 %v98, %v94
  %v119 = vpack.c.b16 %v99, %v95
  %v120 = vpack.c.b16 %v104, %v100
  %v121 = vpack.c.b16 %v105, %v101
  %v122 = vpack.c.b16 %v106, %v102
  %v123 = vpack.c.b16 %v107, %v103
  %vm140 = vcmask 523264
  %v142 = vsel %vm140, %v33, 0
  %144 = vmatpush.bf16.msra.mxu0 0
  %145 = vmatpush.bf16.msra.mxu0 0
  %146 = vmatpush.bf16.msra.mxu0 0
  %147 = vmatpush.bf16.msra.mxu0 0
  %148 = vmatpush.bf16.msra.mxu0 %v120
  %149 = vmatpush.bf16.msra.mxu0 %v116
  %150 = vmatpush.bf16.msra.mxu0 %v112
  %151 = vmatpush.bf16.msra.mxu0 %v108
  %152 = vmatmul.bf16.gmra.mxu0 %v142
  %v153 = vpop.f32.mrf.mxu0
  %v154 = vadd.f32 %v52, %v153
  %v155 = vpop.f32.mrf.mxu0
  %156 = vdwg.mxu0
  %157 = vmatpush.bf16.msra.mxu0 0
  %158 = vmatpush.bf16.msra.mxu0 0
  %159 = vmatpush.bf16.msra.mxu0 0
  %160 = vmatpush.bf16.msra.mxu0 0
  %161 = vmatpush.bf16.msra.mxu0 %v121
  %162 = vmatpush.bf16.msra.mxu0 %v117
  %163 = vmatpush.bf16.msra.mxu0 %v113
  %164 = vmatpush.bf16.msra.mxu0 %v109
  %165 = vmatmul.bf16.gmra.mxu0 %v142
  %v166 = vpop.f32.mrf.mxu0
  %v167 = vadd.f32 %v53, %v166
  %v168 = vpop.f32.mrf.mxu0
  %169 = vdwg.mxu0
  %170 = vmatpush.bf16.msra.mxu0 0
  %171 = vmatpush.bf16.msra.mxu0 0
  %172 = vmatpush.bf16.msra.mxu0 0
  %173 = vmatpush.bf16.msra.mxu0 0
  %174 = vmatpush.bf16.msra.mxu0 %v122
  %175 = vmatpush.bf16.msra.mxu0 %v118
  %176 = vmatpush.bf16.msra.mxu0 %v114
  %177 = vmatpush.bf16.msra.mxu0 %v110
  %178 = vmatmul.bf16.gmra.mxu0 %v142
  %v179 = vpop.f32.mrf.mxu0
  %v180 = vadd.f32 %v54, %v179
  %v181 = vpop.f32.mrf.mxu0
  %182 = vdwg.mxu0
  %183 = vmatpush.bf16.msra.mxu0 0
  %184 = vmatpush.bf16.msra.mxu0 0
  %185 = vmatpush.bf16.msra.mxu0 0
  %186 = vmatpush.bf16.msra.mxu0 0
  %187 = vmatpush.bf16.msra.mxu0 %v123
  %188 = vmatpush.bf16.msra.mxu0 %v119
  %189 = vmatpush.bf16.msra.mxu0 %v115
  %190 = vmatpush.bf16.msra.mxu0 %v111
  %191 = vmatmul.bf16.gmra.mxu0 %v142
  %v192 = vpop.f32.mrf.mxu0
  %v193 = vadd.f32 %v55, %v192
  %v194 = vpop.f32.mrf.mxu0
  %195 = vdwg.mxu0
  %v196 = vtanh.pop %v154
  %v197 = vtanh.pop %v167
  %v198 = vtanh.pop %v180
  %v199 = vtanh.pop %v193
  %v200 = vpack.c.bf16 %v196, %v196
  %v201 = vpack.c.bf16 %v197, %v197
  %v202 = vpack.c.bf16 %v198, %v198
  %v203 = vpack.c.bf16 %v199, %v199
  %v204 = vld [vmem:[%s3] sm:$0xff]
  %v205 = vld [vmem:[%s3 + $0x8] sm:$0xff]
  %v206 = vld [vmem:[%s3 + $0x10] sm:$0xff]
  %v207 = vld [vmem:[%s3 + $0x18] sm:$0xff]
  %v208 = vld [vmem:[%s3 + $0x20] sm:$0xff]
  %v209 = vld [vmem:[%s3 + $0x28] sm:$0xff]
  %v210 = vld [vmem:[%s3 + $0x30] sm:$0xff]
  %v211 = vld [vmem:[%s3 + $0x38] sm:$0xff]
  %v212 = vld [vmem:[%s3 + $0x40] sm:$0xff]
  %v213 = vld [vmem:[%s3 + $0x48] sm:$0xff]
  %v214 = vld [vmem:[%s3 + $0x50] sm:$0xff]
  %v215 = vld [vmem:[%s3 + $0x58] sm:$0xff]
  %v216 = vld [vmem:[%s3 + $0x60] sm:$0xff]
  %v217 = vld [vmem:[%s3 + $0x68] sm:$0xff]
  %v218 = vld [vmem:[%s3 + $0x70] sm:$0xff]
  %v219 = vld [vmem:[%s3 + $0x78] sm:$0xff]
  %v220 = vld [vmem:[%s3 + $0x80] sm:$0xff]
  %v221 = vld [vmem:[%s3 + $0x88] sm:$0xff]
  %v222 = vld [vmem:[%s3 + $0x90] sm:$0xff]
  %v223 = vld [vmem:[%s3 + $0x98] sm:$0xff]
  %v224 = vld [vmem:[%s3 + $0xa0] sm:$0xff]
  %v225 = vld [vmem:[%s3 + $0xa8] sm:$0xff]
  %v226 = vld [vmem:[%s3 + $0xb0] sm:$0xff]
  %v227 = vld [vmem:[%s3 + $0xb8] sm:$0xff]
  %v228 = vld [vmem:[%s3 + $0xc0] sm:$0xff]
  %v229 = vld [vmem:[%s3 + $0xc8] sm:$0xff]
  %v230 = vld [vmem:[%s3 + $0xd0] sm:$0xff]
  %v231 = vld [vmem:[%s3 + $0xd8] sm:$0xff]
  %v232 = vld [vmem:[%s3 + $0xe0] sm:$0xff]
  %v233 = vld [vmem:[%s3 + $0xe8] sm:$0xff]
  %v234 = vld [vmem:[%s3 + $0xf0] sm:$0xff]
  %v235 = vld [vmem:[%s3 + $0xf8] sm:$0xff]
  %v236 = vld [vmem:[%s3 + $0x100] sm:$0xff]
  %v237 = vld [vmem:[%s3 + $0x108] sm:$0xff]
  %v238 = vld [vmem:[%s3 + $0x110] sm:$0xff]
  %v239 = vld [vmem:[%s3 + $0x118] sm:$0xff]
  %v240 = vld [vmem:[%s3 + $0x120] sm:$0xff]
  %v241 = vld [vmem:[%s3 + $0x128] sm:$0xff]
  %v242 = vld [vmem:[%s3 + $0x130] sm:$0xff]
  %v243 = vld [vmem:[%s3 + $0x138] sm:$0xff]
  %v244 = vld [vmem:[%s3 + $0x140] sm:$0xff]
  %v245 = vld [vmem:[%s3 + $0x148] sm:$0xff]
  %v246 = vld [vmem:[%s3 + $0x150] sm:$0xff]
  %v247 = vld [vmem:[%s3 + $0x158] sm:$0xff]
  %v248 = vld [vmem:[%s3 + $0x160] sm:$0xff]
  %v249 = vld [vmem:[%s3 + $0x168] sm:$0xff]
  %v250 = vld [vmem:[%s3 + $0x170] sm:$0xff]
  %v251 = vld [vmem:[%s3 + $0x178] sm:$0xff]
  %v252 = vld [vmem:[%s3 + $0x180] sm:$0xff]
  %v253 = vld [vmem:[%s3 + $0x188] sm:$0xff]
  %v254 = vld [vmem:[%s3 + $0x190] sm:$0xff]
  %v255 = vld [vmem:[%s3 + $0x198] sm:$0xff]
  %v256 = vld [vmem:[%s3 + $0x1a0] sm:$0xff]
  %v257 = vld [vmem:[%s3 + $0x1a8] sm:$0xff]
  %v258 = vld [vmem:[%s3 + $0x1b0] sm:$0xff]
  %v259 = vld [vmem:[%s3 + $0x1b8] sm:$0xff]
  %v260 = vld [vmem:[%s3 + $0x1c0] sm:$0xff]
  %v261 = vld [vmem:[%s3 + $0x1c8] sm:$0xff]
  %v262 = vld [vmem:[%s3 + $0x1d0] sm:$0xff]
  %v263 = vld [vmem:[%s3 + $0x1d8] sm:$0xff]
  %v264 = vld [vmem:[%s3 + $0x1e0] sm:$0xff]
  %v265 = vld [vmem:[%s3 + $0x1e8] sm:$0xff]
  %v266 = vld [vmem:[%s3 + $0x1f0] sm:$0xff]
  %v267 = vld [vmem:[%s3 + $0x1f8] sm:$0xff]
  %v268 = vld [vmem:[%s3 + $0x200] sm:$0xff]
  %v269 = vld [vmem:[%s3 + $0x208] sm:$0xff]
  %v270 = vld [vmem:[%s3 + $0x210] sm:$0xff]
  %v271 = vld [vmem:[%s3 + $0x218] sm:$0xff]
  %v272 = vld [vmem:[%s3 + $0x220] sm:$0xff]
  %v273 = vld [vmem:[%s3 + $0x228] sm:$0xff]
  %v274 = vld [vmem:[%s3 + $0x230] sm:$0xff]
  %v275 = vld [vmem:[%s3 + $0x238] sm:$0xff]
  %v276 = vld [vmem:[%s3 + $0x240] sm:$0xff]
  %v277 = vld [vmem:[%s3 + $0x248] sm:$0xff]
  %v278 = vld [vmem:[%s3 + $0x250] sm:$0xff]
  %v279 = vld [vmem:[%s3 + $0x258] sm:$0xff]
  %v280 = vld [vmem:[%s3 + $0x260] sm:$0xff]
  %v281 = vld [vmem:[%s3 + $0x268] sm:$0xff]
  %v282 = vld [vmem:[%s3 + $0x270] sm:$0xff]
  %v283 = vld [vmem:[%s3 + $0x278] sm:$0xff]
  %v284 = vld [vmem:[%s3 + $0x280] sm:$0xff]
  %v285 = vld [vmem:[%s3 + $0x288] sm:$0xff]
  %v286 = vld [vmem:[%s3 + $0x290] sm:$0xff]
  %v287 = vld [vmem:[%s3 + $0x298] sm:$0xff]
  %v288 = vld [vmem:[%s3 + $0x2a0] sm:$0xff]
  %v289 = vld [vmem:[%s3 + $0x2a8] sm:$0xff]
  %v290 = vld [vmem:[%s3 + $0x2b0] sm:$0xff]
  %v291 = vld [vmem:[%s3 + $0x2b8] sm:$0xff]
  %v292 = vld [vmem:[%s3 + $0x2c0] sm:$0xff]
  %v293 = vld [vmem:[%s3 + $0x2c8] sm:$0xff]
  %v294 = vld [vmem:[%s3 + $0x2d0] sm:$0xff]
  %v295 = vld [vmem:[%s3 + $0x2d8] sm:$0xff]
  %v296 = vld [vmem:[%s3 + $0x2e0] sm:$0xff]
  %v297 = vld [vmem:[%s3 + $0x2e8] sm:$0xff]
  %v298 = vld [vmem:[%s3 + $0x2f0] sm:$0xff]
  %v299 = vld [vmem:[%s3 + $0x2f8] sm:$0xff]
  %v300 = vld [vmem:[%s3 + $0x300] sm:$0xff]
  %v301 = vld [vmem:[%s3 + $0x308] sm:$0xff]
  %v302 = vld [vmem:[%s3 + $0x310] sm:$0xff]
  %v303 = vld [vmem:[%s3 + $0x318] sm:$0xff]
  %v304 = vld [vmem:[%s3 + $0x320] sm:$0xff]
  %v305 = vld [vmem:[%s3 + $0x328] sm:$0xff]
  %v306 = vld [vmem:[%s3 + $0x330] sm:$0xff]
  %v307 = vld [vmem:[%s3 + $0x338] sm:$0xff]
  %v308 = vld [vmem:[%s3 + $0x340] sm:$0xff]
  %v309 = vld [vmem:[%s3 + $0x348] sm:$0xff]
  %v310 = vld [vmem:[%s3 + $0x350] sm:$0xff]
  %v311 = vld [vmem:[%s3 + $0x358] sm:$0xff]
  %v312 = vld [vmem:[%s3 + $0x360] sm:$0xff]
  %v313 = vld [vmem:[%s3 + $0x368] sm:$0xff]
  %v314 = vld [vmem:[%s3 + $0x370] sm:$0xff]
  %v315 = vld [vmem:[%s3 + $0x378] sm:$0xff]
  %v316 = vld [vmem:[%s3 + $0x380] sm:$0xff]
  %v317 = vld [vmem:[%s3 + $0x388] sm:$0xff]
  %v318 = vld [vmem:[%s3 + $0x390] sm:$0xff]
  %v319 = vld [vmem:[%s3 + $0x398] sm:$0xff]
  %v320 = vld [vmem:[%s3 + $0x3a0] sm:$0xff]
  %v321 = vld [vmem:[%s3 + $0x3a8] sm:$0xff]
  %v322 = vld [vmem:[%s3 + $0x3b0] sm:$0xff]
  %v323 = vld [vmem:[%s3 + $0x3b8] sm:$0xff]
  %v324 = vld [vmem:[%s3 + $0x3c0] sm:$0xff]
  %v325 = vld [vmem:[%s3 + $0x3c8] sm:$0xff]
  %v326 = vld [vmem:[%s3 + $0x3d0] sm:$0xff]
  %v327 = vld [vmem:[%s3 + $0x3d8] sm:$0xff]
  %v328 = vld [vmem:[%s3 + $0x3e0] sm:$0xff]
  %v329 = vld [vmem:[%s3 + $0x3e8] sm:$0xff]
  %v330 = vld [vmem:[%s3 + $0x3f0] sm:$0xff]
  %v331 = vld [vmem:[%s3 + $0x3f8] sm:$0xff]
  %v332 = vld [vmem:[%s4] sm:$0xf]
  %v334 = vperm.slane %v332, 0
  %v335 = vperm.slane %v332, 1
  %v336 = vperm.slane %v332, 2
  %v337 = vperm.slane %v332, 3
  %v470 = vunpack.c.l.b16 %v204
  %v471 = vunpack.c.h.b16 %v204
  %v472 = vunpack.c.l.b16 %v205
  %v473 = vunpack.c.h.b16 %v205
  %v474 = vunpack.c.l.b16 %v206
  %v475 = vunpack.c.h.b16 %v206
  %v476 = vunpack.c.l.b16 %v207
  %v477 = vunpack.c.h.b16 %v207
  %v478 = vunpack.c.l.b16 %v208
  %v479 = vunpack.c.h.b16 %v208
  %v480 = vunpack.c.l.b16 %v209
  %v481 = vunpack.c.h.b16 %v209
  %v482 = vunpack.c.l.b16 %v210
  %v483 = vunpack.c.h.b16 %v210
  %v484 = vunpack.c.l.b16 %v211
  %v485 = vunpack.c.h.b16 %v211
  %v486 = vunpack.c.l.b16 %v212
  %v487 = vunpack.c.h.b16 %v212
  %v488 = vunpack.c.l.b16 %v213
  %v489 = vunpack.c.h.b16 %v213
  %v490 = vunpack.c.l.b16 %v214
  %v491 = vunpack.c.h.b16 %v214
  %v492 = vunpack.c.l.b16 %v215
  %v493 = vunpack.c.h.b16 %v215
  %v494 = vunpack.c.l.b16 %v216
  %v495 = vunpack.c.h.b16 %v216
  %v496 = vunpack.c.l.b16 %v217
  %v497 = vunpack.c.h.b16 %v217
  %v498 = vunpack.c.l.b16 %v218
  %v499 = vunpack.c.h.b16 %v218
  %v500 = vunpack.c.l.b16 %v219
  %v501 = vunpack.c.h.b16 %v219
  %v502 = vunpack.c.l.b16 %v220
  %v503 = vunpack.c.h.b16 %v220
  %v504 = vunpack.c.l.b16 %v221
  %v505 = vunpack.c.h.b16 %v221
  %v506 = vunpack.c.l.b16 %v222
  %v507 = vunpack.c.h.b16 %v222
  %v508 = vunpack.c.l.b16 %v223
  %v509 = vunpack.c.h.b16 %v223
  %v510 = vunpack.c.l.b16 %v224
  %v511 = vunpack.c.h.b16 %v224
  %v512 = vunpack.c.l.b16 %v225
  %v513 = vunpack.c.h.b16 %v225
  %v514 = vunpack.c.l.b16 %v226
  %v515 = vunpack.c.h.b16 %v226
  %v516 = vunpack.c.l.b16 %v227
  %v517 = vunpack.c.h.b16 %v227
  %v518 = vunpack.c.l.b16 %v228
  %v519 = vunpack.c.h.b16 %v228
  %v520 = vunpack.c.l.b16 %v229
  %v521 = vunpack.c.h.b16 %v229
  %v522 = vunpack.c.l.b16 %v230
  %v523 = vunpack.c.h.b16 %v230
  %v524 = vunpack.c.l.b16 %v231
  %v525 = vunpack.c.h.b16 %v231
  %v526 = vunpack.c.l.b16 %v232
  %v527 = vunpack.c.h.b16 %v232
  %v528 = vunpack.c.l.b16 %v233
  %v529 = vunpack.c.h.b16 %v233
  %v530 = vunpack.c.l.b16 %v234
  %v531 = vunpack.c.h.b16 %v234
  %v532 = vunpack.c.l.b16 %v235
  %v533 = vunpack.c.h.b16 %v235
  %v534 = vunpack.c.l.b16 %v236
  %v535 = vunpack.c.h.b16 %v236
  %v536 = vunpack.c.l.b16 %v237
  %v537 = vunpack.c.h.b16 %v237
  %v538 = vunpack.c.l.b16 %v238
  %v539 = vunpack.c.h.b16 %v238
  %v540 = vunpack.c.l.b16 %v239
  %v541 = vunpack.c.h.b16 %v239
  %v542 = vunpack.c.l.b16 %v240
  %v543 = vunpack.c.h.b16 %v240
  %v544 = vunpack.c.l.b16 %v241
  %v545 = vunpack.c.h.b16 %v241
  %v546 = vunpack.c.l.b16 %v242
  %v547 = vunpack.c.h.b16 %v242
  %v548 = vunpack.c.l.b16 %v243
  %v549 = vunpack.c.h.b16 %v243
  %v550 = vunpack.c.l.b16 %v244
  %v551 = vunpack.c.h.b16 %v244
  %v552 = vunpack.c.l.b16 %v245
  %v553 = vunpack.c.h.b16 %v245
  %v554 = vunpack.c.l.b16 %v246
  %v555 = vunpack.c.h.b16 %v246
  %v556 = vunpack.c.l.b16 %v247
  %v557 = vunpack.c.h.b16 %v247
  %v558 = vunpack.c.l.b16 %v248
  %v559 = vunpack.c.h.b16 %v248
  %v560 = vunpack.c.l.b16 %v249
  %v561 = vunpack.c.h.b16 %v249
  %v562 = vunpack.c.l.b16 %v250
  %v563 = vunpack.c.h.b16 %v250
  %v564 = vunpack.c.l.b16 %v251
  %v565 = vunpack.c.h.b16 %v251
  %v566 = vunpack.c.l.b16 %v252
  %v567 = vunpack.c.h.b16 %v252
  %v568 = vunpack.c.l.b16 %v253
  %v569 = vunpack.c.h.b16 %v253
  %v570 = vunpack.c.l.b16 %v254
  %v571 = vunpack.c.h.b16 %v254
  %v572 = vunpack.c.l.b16 %v255
  %v573 = vunpack.c.h.b16 %v255
  %v574 = vunpack.c.l.b16 %v256
  %v575 = vunpack.c.h.b16 %v256
  %v576 = vunpack.c.l.b16 %v257
  %v577 = vunpack.c.h.b16 %v257
  %v578 = vunpack.c.l.b16 %v258
  %v579 = vunpack.c.h.b16 %v258
  %v580 = vunpack.c.l.b16 %v259
  %v581 = vunpack.c.h.b16 %v259
  %v582 = vunpack.c.l.b16 %v260
  %v583 = vunpack.c.h.b16 %v260
  %v584 = vunpack.c.l.b16 %v261
  %v585 = vunpack.c.h.b16 %v261
  %v586 = vunpack.c.l.b16 %v262
  %v587 = vunpack.c.h.b16 %v262
  %v588 = vunpack.c.l.b16 %v263
  %v589 = vunpack.c.h.b16 %v263
  %v590 = vunpack.c.l.b16 %v264
  %v591 = vunpack.c.h.b16 %v264
  %v592 = vunpack.c.l.b16 %v265
  %v593 = vunpack.c.h.b16 %v265
  %v594 = vunpack.c.l.b16 %v266
  %v595 = vunpack.c.h.b16 %v266
  %v596 = vunpack.c.l.b16 %v267
  %v597 = vunpack.c.h.b16 %v267
  %v598 = vunpack.c.l.b16 %v268
  %v599 = vunpack.c.h.b16 %v268
  %v600 = vunpack.c.l.b16 %v269
  %v601 = vunpack.c.h.b16 %v269
  %v602 = vunpack.c.l.b16 %v270
  %v603 = vunpack.c.h.b16 %v270
  %v604 = vunpack.c.l.b16 %v271
  %v605 = vunpack.c.h.b16 %v271
  %v606 = vunpack.c.l.b16 %v272
  %v607 = vunpack.c.h.b16 %v272
  %v608 = vunpack.c.l.b16 %v273
  %v609 = vunpack.c.h.b16 %v273
  %v610 = vunpack.c.l.b16 %v274
  %v611 = vunpack.c.h.b16 %v274
  %v612 = vunpack.c.l.b16 %v275
  %v613 = vunpack.c.h.b16 %v275
  %v614 = vunpack.c.l.b16 %v276
  %v615 = vunpack.c.h.b16 %v276
  %v616 = vunpack.c.l.b16 %v277
  %v617 = vunpack.c.h.b16 %v277
  %v618 = vunpack.c.l.b16 %v278
  %v619 = vunpack.c.h.b16 %v278
  %v620 = vunpack.c.l.b16 %v279
  %v621 = vunpack.c.h.b16 %v279
  %v622 = vunpack.c.l.b16 %v280
  %v623 = vunpack.c.h.b16 %v280
  %v624 = vunpack.c.l.b16 %v281
  %v625 = vunpack.c.h.b16 %v281
  %v626 = vunpack.c.l.b16 %v282
  %v627 = vunpack.c.h.b16 %v282
  %v628 = vunpack.c.l.b16 %v283
  %v629 = vunpack.c.h.b16 %v283
  %v630 = vunpack.c.l.b16 %v284
  %v631 = vunpack.c.h.b16 %v284
  %v632 = vunpack.c.l.b16 %v285
  %v633 = vunpack.c.h.b16 %v285
  %v634 = vunpack.c.l.b16 %v286
  %v635 = vunpack.c.h.b16 %v286
  %v636 = vunpack.c.l.b16 %v287
  %v637 = vunpack.c.h.b16 %v287
  %v638 = vunpack.c.l.b16 %v288
  %v639 = vunpack.c.h.b16 %v288
  %v640 = vunpack.c.l.b16 %v289
  %v641 = vunpack.c.h.b16 %v289
  %v642 = vunpack.c.l.b16 %v290
  %v643 = vunpack.c.h.b16 %v290
  %v644 = vunpack.c.l.b16 %v291
  %v645 = vunpack.c.h.b16 %v291
  %v646 = vunpack.c.l.b16 %v292
  %v647 = vunpack.c.h.b16 %v292
  %v648 = vunpack.c.l.b16 %v293
  %v649 = vunpack.c.h.b16 %v293
  %v650 = vunpack.c.l.b16 %v294
  %v651 = vunpack.c.h.b16 %v294
  %v652 = vunpack.c.l.b16 %v295
  %v653 = vunpack.c.h.b16 %v295
  %v654 = vunpack.c.l.b16 %v296
  %v655 = vunpack.c.h.b16 %v296
  %v656 = vunpack.c.l.b16 %v297
  %v657 = vunpack.c.h.b16 %v297
  %v658 = vunpack.c.l.b16 %v298
  %v659 = vunpack.c.h.b16 %v298
  %v660 = vunpack.c.l.b16 %v299
  %v661 = vunpack.c.h.b16 %v299
  %v662 = vunpack.c.l.b16 %v300
  %v663 = vunpack.c.h.b16 %v300
  %v664 = vunpack.c.l.b16 %v301
  %v665 = vunpack.c.h.b16 %v301
  %v666 = vunpack.c.l.b16 %v302
  %v667 = vunpack.c.h.b16 %v302
  %v668 = vunpack.c.l.b16 %v303
  %v669 = vunpack.c.h.b16 %v303
  %v670 = vunpack.c.l.b16 %v304
  %v671 = vunpack.c.h.b16 %v304
  %v672 = vunpack.c.l.b16 %v305
  %v673 = vunpack.c.h.b16 %v305
  %v674 = vunpack.c.l.b16 %v306
  %v675 = vunpack.c.h.b16 %v306
  %v676 = vunpack.c.l.b16 %v307
  %v677 = vunpack.c.h.b16 %v307
  %v678 = vunpack.c.l.b16 %v308
  %v679 = vunpack.c.h.b16 %v308
  %v680 = vunpack.c.l.b16 %v309
  %v681 = vunpack.c.h.b16 %v309
  %v682 = vunpack.c.l.b16 %v310
  %v683 = vunpack.c.h.b16 %v310
  %v684 = vunpack.c.l.b16 %v311
  %v685 = vunpack.c.h.b16 %v311
  %v686 = vunpack.c.l.b16 %v312
  %v687 = vunpack.c.h.b16 %v312
  %v688 = vunpack.c.l.b16 %v313
  %v689 = vunpack.c.h.b16 %v313
  %v690 = vunpack.c.l.b16 %v314
  %v691 = vunpack.c.h.b16 %v314
  %v692 = vunpack.c.l.b16 %v315
  %v693 = vunpack.c.h.b16 %v315
  %v694 = vunpack.c.l.b16 %v316
  %v695 = vunpack.c.h.b16 %v316
  %v696 = vunpack.c.l.b16 %v317
  %v697 = vunpack.c.h.b16 %v317
  %v698 = vunpack.c.l.b16 %v318
  %v699 = vunpack.c.h.b16 %v318
  %v700 = vunpack.c.l.b16 %v319
  %v701 = vunpack.c.h.b16 %v319
  %v702 = vunpack.c.l.b16 %v320
  %v703 = vunpack.c.h.b16 %v320
  %v704 = vunpack.c.l.b16 %v321
  %v705 = vunpack.c.h.b16 %v321
  %v706 = vunpack.c.l.b16 %v322
  %v707 = vunpack.c.h.b16 %v322
  %v708 = vunpack.c.l.b16 %v323
  %v709 = vunpack.c.h.b16 %v323
  %v710 = vunpack.c.l.b16 %v324
  %v711 = vunpack.c.h.b16 %v324
  %v712 = vunpack.c.l.b16 %v325
  %v713 = vunpack.c.h.b16 %v325
  %v714 = vunpack.c.l.b16 %v326
  %v715 = vunpack.c.h.b16 %v326
  %v716 = vunpack.c.l.b16 %v327
  %v717 = vunpack.c.h.b16 %v327
  %v718 = vunpack.c.l.b16 %v328
  %v719 = vunpack.c.h.b16 %v328
  %v720 = vunpack.c.l.b16 %v329
  %v721 = vunpack.c.h.b16 %v329
  %v722 = vunpack.c.l.b16 %v330
  %v723 = vunpack.c.h.b16 %v330
  %v724 = vunpack.c.l.b16 %v331
  %v725 = vunpack.c.h.b16 %v331
  %v726 = vpack.c.b16 %v474, %v470
  %v727 = vpack.c.b16 %v475, %v471
  %v728 = vpack.c.b16 %v476, %v472
  %v729 = vpack.c.b16 %v477, %v473
  %v730 = vpack.c.b16 %v482, %v478
  %v731 = vpack.c.b16 %v483, %v479
  %v732 = vpack.c.b16 %v484, %v480
  %v733 = vpack.c.b16 %v485, %v481
  %v734 = vpack.c.b16 %v490, %v486
  %v735 = vpack.c.b16 %v491, %v487
  %v736 = vpack.c.b16 %v492, %v488
  %v737 = vpack.c.b16 %v493, %v489
  %v738 = vpack.c.b16 %v498, %v494
  %v739 = vpack.c.b16 %v499, %v495
  %v740 = vpack.c.b16 %v500, %v496
  %v741 = vpack.c.b16 %v501, %v497
  %v742 = vpack.c.b16 %v506, %v502
  %v743 = vpack.c.b16 %v507, %v503
  %v744 = vpack.c.b16 %v508, %v504
  %v745 = vpack.c.b16 %v509, %v505
  %v746 = vpack.c.b16 %v514, %v510
  %v747 = vpack.c.b16 %v515, %v511
  %v748 = vpack.c.b16 %v516, %v512
  %v749 = vpack.c.b16 %v517, %v513
  %v750 = vpack.c.b16 %v522, %v518
  %v751 = vpack.c.b16 %v523, %v519
  %v752 = vpack.c.b16 %v524, %v520
  %v753 = vpack.c.b16 %v525, %v521
  %v754 = vpack.c.b16 %v530, %v526
  %v755 = vpack.c.b16 %v531, %v527
  %v756 = vpack.c.b16 %v532, %v528
  %v757 = vpack.c.b16 %v533, %v529
  %v758 = vpack.c.b16 %v538, %v534
  %v759 = vpack.c.b16 %v539, %v535
  %v760 = vpack.c.b16 %v540, %v536
  %v761 = vpack.c.b16 %v541, %v537
  %v762 = vpack.c.b16 %v546, %v542
  %v763 = vpack.c.b16 %v547, %v543
  %v764 = vpack.c.b16 %v548, %v544
  %v765 = vpack.c.b16 %v549, %v545
  %v766 = vpack.c.b16 %v554, %v550
  %v767 = vpack.c.b16 %v555, %v551
  %v768 = vpack.c.b16 %v556, %v552
  %v769 = vpack.c.b16 %v557, %v553
  %v770 = vpack.c.b16 %v562, %v558
  %v771 = vpack.c.b16 %v563, %v559
  %v772 = vpack.c.b16 %v564, %v560
  %v773 = vpack.c.b16 %v565, %v561
  %v774 = vpack.c.b16 %v570, %v566
  %v775 = vpack.c.b16 %v571, %v567
  %v776 = vpack.c.b16 %v572, %v568
  %v777 = vpack.c.b16 %v573, %v569
  %v778 = vpack.c.b16 %v578, %v574
  %v779 = vpack.c.b16 %v579, %v575
  %v780 = vpack.c.b16 %v580, %v576
  %v781 = vpack.c.b16 %v581, %v577
  %v782 = vpack.c.b16 %v586, %v582
  %v783 = vpack.c.b16 %v587, %v583
  %v784 = vpack.c.b16 %v588, %v584
  %v785 = vpack.c.b16 %v589, %v585
  %v786 = vpack.c.b16 %v594, %v590
  %v787 = vpack.c.b16 %v595, %v591
  %v788 = vpack.c.b16 %v596, %v592
  %v789 = vpack.c.b16 %v597, %v593
  %v790 = vpack.c.b16 %v602, %v598
  %v791 = vpack.c.b16 %v603, %v599
  %v792 = vpack.c.b16 %v604, %v600
  %v793 = vpack.c.b16 %v605, %v601
  %v794 = vpack.c.b16 %v610, %v606
  %v795 = vpack.c.b16 %v611, %v607
  %v796 = vpack.c.b16 %v612, %v608
  %v797 = vpack.c.b16 %v613, %v609
  %v798 = vpack.c.b16 %v618, %v614
  %v799 = vpack.c.b16 %v619, %v615
  %v800 = vpack.c.b16 %v620, %v616
  %v801 = vpack.c.b16 %v621, %v617
  %v802 = vpack.c.b16 %v626, %v622
  %v803 = vpack.c.b16 %v627, %v623
  %v804 = vpack.c.b16 %v628, %v624
  %v805 = vpack.c.b16 %v629, %v625
  %v806 = vpack.c.b16 %v634, %v630
  %v807 = vpack.c.b16 %v635, %v631
  %v808 = vpack.c.b16 %v636, %v632
  %v809 = vpack.c.b16 %v637, %v633
  %v810 = vpack.c.b16 %v642, %v638
  %v811 = vpack.c.b16 %v643, %v639
  %v812 = vpack.c.b16 %v644, %v640
  %v813 = vpack.c.b16 %v645, %v641
  %v814 = vpack.c.b16 %v650, %v646
  %v815 = vpack.c.b16 %v651, %v647
  %v816 = vpack.c.b16 %v652, %v648
  %v817 = vpack.c.b16 %v653, %v649
  %v818 = vpack.c.b16 %v658, %v654
  %v819 = vpack.c.b16 %v659, %v655
  %v820 = vpack.c.b16 %v660, %v656
  %v821 = vpack.c.b16 %v661, %v657
  %v822 = vpack.c.b16 %v666, %v662
  %v823 = vpack.c.b16 %v667, %v663
  %v824 = vpack.c.b16 %v668, %v664
  %v825 = vpack.c.b16 %v669, %v665
  %v826 = vpack.c.b16 %v674, %v670
  %v827 = vpack.c.b16 %v675, %v671
  %v828 = vpack.c.b16 %v676, %v672
  %v829 = vpack.c.b16 %v677, %v673
  %v830 = vpack.c.b16 %v682, %v678
  %v831 = vpack.c.b16 %v683, %v679
  %v832 = vpack.c.b16 %v684, %v680
  %v833 = vpack.c.b16 %v685, %v681
  %v834 = vpack.c.b16 %v690, %v686
  %v835 = vpack.c.b16 %v691, %v687
  %v836 = vpack.c.b16 %v692, %v688
  %v837 = vpack.c.b16 %v693, %v689
  %v838 = vpack.c.b16 %v698, %v694
  %v839 = vpack.c.b16 %v699, %v695
  %v840 = vpack.c.b16 %v700, %v696
  %v841 = vpack.c.b16 %v701, %v697
  %v842 = vpack.c.b16 %v706, %v702
  %v843 = vpack.c.b16 %v707, %v703
  %v844 = vpack.c.b16 %v708, %v704
  %v845 = vpack.c.b16 %v709, %v705
  %v846 = vpack.c.b16 %v714, %v710
  %v847 = vpack.c.b16 %v715, %v711
  %v848 = vpack.c.b16 %v716, %v712
  %v849 = vpack.c.b16 %v717, %v713
  %v850 = vpack.c.b16 %v722, %v718
  %v851 = vpack.c.b16 %v723, %v719
  %v852 = vpack.c.b16 %v724, %v720
  %v853 = vpack.c.b16 %v725, %v721
  %982 = vmatpush.bf16.msra.mxu0 %v754
  %983 = vmatpush.bf16.msra.mxu0 %v750
  %984 = vmatpush.bf16.msra.mxu0 %v746
  %985 = vmatpush.bf16.msra.mxu0 %v742
  %986 = vmatpush.bf16.msra.mxu0 %v738
  %987 = vmatpush.bf16.msra.mxu0 %v734
  %988 = vmatpush.bf16.msra.mxu0 %v730
  %989 = vmatpush.bf16.msra.mxu0 %v726
  %990 = vmatmul.bf16.gmra.mxu0 %v200
  %v991 = vpop.f32.mrf.mxu0
  %v992 = vadd.f32 %v334, %v991
  %v993 = vpop.f32.mrf.mxu0
  %994 = vdwg.mxu0
  %995 = vmatpush.bf16.msra.mxu0 %v786
  %996 = vmatpush.bf16.msra.mxu0 %v782
  %997 = vmatpush.bf16.msra.mxu0 %v778
  %998 = vmatpush.bf16.msra.mxu0 %v774
  %999 = vmatpush.bf16.msra.mxu0 %v770
  %1000 = vmatpush.bf16.msra.mxu0 %v766
  %1001 = vmatpush.bf16.msra.mxu0 %v762
  %1002 = vmatpush.bf16.msra.mxu0 %v758
  %1003 = vmatmul.bf16.gmra.mxu0 %v201
  %v1004 = vpop.f32.mrf.mxu0
  %v1005 = vadd.f32 %v992, %v1004
  %v1006 = vpop.f32.mrf.mxu0
  %1007 = vdwg.mxu0
  %1008 = vmatpush.bf16.msra.mxu0 %v818
  %1009 = vmatpush.bf16.msra.mxu0 %v814
  %1010 = vmatpush.bf16.msra.mxu0 %v810
  %1011 = vmatpush.bf16.msra.mxu0 %v806
  %1012 = vmatpush.bf16.msra.mxu0 %v802
  %1013 = vmatpush.bf16.msra.mxu0 %v798
  %1014 = vmatpush.bf16.msra.mxu0 %v794
  %1015 = vmatpush.bf16.msra.mxu0 %v790
  %1016 = vmatmul.bf16.gmra.mxu0 %v202
  %v1017 = vpop.f32.mrf.mxu0
  %v1018 = vadd.f32 %v1005, %v1017
  %v1019 = vpop.f32.mrf.mxu0
  %1020 = vdwg.mxu0
  %1021 = vmatpush.bf16.msra.mxu0 %v850
  %1022 = vmatpush.bf16.msra.mxu0 %v846
  %1023 = vmatpush.bf16.msra.mxu0 %v842
  %1024 = vmatpush.bf16.msra.mxu0 %v838
  %1025 = vmatpush.bf16.msra.mxu0 %v834
  %1026 = vmatpush.bf16.msra.mxu0 %v830
  %1027 = vmatpush.bf16.msra.mxu0 %v826
  %1028 = vmatpush.bf16.msra.mxu0 %v822
  %1029 = vmatmul.bf16.gmra.mxu0 %v203
  %v1030 = vpop.f32.mrf.mxu0
  %v1031 = vadd.f32 %v1018, %v1030
  %v1032 = vpop.f32.mrf.mxu0
  %1033 = vdwg.mxu0
  %1034 = vmatpush.bf16.msra.mxu0 %v755
  %1035 = vmatpush.bf16.msra.mxu0 %v751
  %1036 = vmatpush.bf16.msra.mxu0 %v747
  %1037 = vmatpush.bf16.msra.mxu0 %v743
  %1038 = vmatpush.bf16.msra.mxu0 %v739
  %1039 = vmatpush.bf16.msra.mxu0 %v735
  %1040 = vmatpush.bf16.msra.mxu0 %v731
  %1041 = vmatpush.bf16.msra.mxu0 %v727
  %1042 = vmatmul.bf16.gmra.mxu0 %v200
  %v1043 = vpop.f32.mrf.mxu0
  %v1044 = vadd.f32 %v335, %v1043
  %v1045 = vpop.f32.mrf.mxu0
  %1046 = vdwg.mxu0
  %1047 = vmatpush.bf16.msra.mxu0 %v787
  %1048 = vmatpush.bf16.msra.mxu0 %v783
  %1049 = vmatpush.bf16.msra.mxu0 %v779
  %1050 = vmatpush.bf16.msra.mxu0 %v775
  %1051 = vmatpush.bf16.msra.mxu0 %v771
  %1052 = vmatpush.bf16.msra.mxu0 %v767
  %1053 = vmatpush.bf16.msra.mxu0 %v763
  %1054 = vmatpush.bf16.msra.mxu0 %v759
  %1055 = vmatmul.bf16.gmra.mxu0 %v201
  %v1056 = vpop.f32.mrf.mxu0
  %v1057 = vadd.f32 %v1044, %v1056
  %v1058 = vpop.f32.mrf.mxu0
  %1059 = vdwg.mxu0
  %1060 = vmatpush.bf16.msra.mxu0 %v819
  %1061 = vmatpush.bf16.msra.mxu0 %v815
  %1062 = vmatpush.bf16.msra.mxu0 %v811
  %1063 = vmatpush.bf16.msra.mxu0 %v807
  %1064 = vmatpush.bf16.msra.mxu0 %v803
  %1065 = vmatpush.bf16.msra.mxu0 %v799
  %1066 = vmatpush.bf16.msra.mxu0 %v795
  %1067 = vmatpush.bf16.msra.mxu0 %v791
  %1068 = vmatmul.bf16.gmra.mxu0 %v202
  %v1069 = vpop.f32.mrf.mxu0
  %v1070 = vadd.f32 %v1057, %v1069
  %v1071 = vpop.f32.mrf.mxu0
  %1072 = vdwg.mxu0
  %1073 = vmatpush.bf16.msra.mxu0 %v851
  %1074 = vmatpush.bf16.msra.mxu0 %v847
  %1075 = vmatpush.bf16.msra.mxu0 %v843
  %1076 = vmatpush.bf16.msra.mxu0 %v839
  %1077 = vmatpush.bf16.msra.mxu0 %v835
  %1078 = vmatpush.bf16.msra.mxu0 %v831
  %1079 = vmatpush.bf16.msra.mxu0 %v827
  %1080 = vmatpush.bf16.msra.mxu0 %v823
  %1081 = vmatmul.bf16.gmra.mxu0 %v203
  %v1082 = vpop.f32.mrf.mxu0
  %v1083 = vadd.f32 %v1070, %v1082
  %v1084 = vpop.f32.mrf.mxu0
  %1085 = vdwg.mxu0
  %1086 = vmatpush.bf16.msra.mxu0 %v756
  %1087 = vmatpush.bf16.msra.mxu0 %v752
  %1088 = vmatpush.bf16.msra.mxu0 %v748
  %1089 = vmatpush.bf16.msra.mxu0 %v744
  %1090 = vmatpush.bf16.msra.mxu0 %v740
  %1091 = vmatpush.bf16.msra.mxu0 %v736
  %1092 = vmatpush.bf16.msra.mxu0 %v732
  %1093 = vmatpush.bf16.msra.mxu0 %v728
  %1094 = vmatmul.bf16.gmra.mxu0 %v200
  %v1095 = vpop.f32.mrf.mxu0
  %v1096 = vadd.f32 %v336, %v1095
  %v1097 = vpop.f32.mrf.mxu0
  %1098 = vdwg.mxu0
  %1099 = vmatpush.bf16.msra.mxu0 %v788
  %1100 = vmatpush.bf16.msra.mxu0 %v784
  %1101 = vmatpush.bf16.msra.mxu0 %v780
  %1102 = vmatpush.bf16.msra.mxu0 %v776
  %1103 = vmatpush.bf16.msra.mxu0 %v772
  %1104 = vmatpush.bf16.msra.mxu0 %v768
  %1105 = vmatpush.bf16.msra.mxu0 %v764
  %1106 = vmatpush.bf16.msra.mxu0 %v760
  %1107 = vmatmul.bf16.gmra.mxu0 %v201
  %v1108 = vpop.f32.mrf.mxu0
  %v1109 = vadd.f32 %v1096, %v1108
  %v1110 = vpop.f32.mrf.mxu0
  %1111 = vdwg.mxu0
  %1112 = vmatpush.bf16.msra.mxu0 %v820
  %1113 = vmatpush.bf16.msra.mxu0 %v816
  %1114 = vmatpush.bf16.msra.mxu0 %v812
  %1115 = vmatpush.bf16.msra.mxu0 %v808
  %1116 = vmatpush.bf16.msra.mxu0 %v804
  %1117 = vmatpush.bf16.msra.mxu0 %v800
  %1118 = vmatpush.bf16.msra.mxu0 %v796
  %1119 = vmatpush.bf16.msra.mxu0 %v792
  %1120 = vmatmul.bf16.gmra.mxu0 %v202
  %v1121 = vpop.f32.mrf.mxu0
  %v1122 = vadd.f32 %v1109, %v1121
  %v1123 = vpop.f32.mrf.mxu0
  %1124 = vdwg.mxu0
  %1125 = vmatpush.bf16.msra.mxu0 %v852
  %1126 = vmatpush.bf16.msra.mxu0 %v848
  %1127 = vmatpush.bf16.msra.mxu0 %v844
  %1128 = vmatpush.bf16.msra.mxu0 %v840
  %1129 = vmatpush.bf16.msra.mxu0 %v836
  %1130 = vmatpush.bf16.msra.mxu0 %v832
  %1131 = vmatpush.bf16.msra.mxu0 %v828
  %1132 = vmatpush.bf16.msra.mxu0 %v824
  %1133 = vmatmul.bf16.gmra.mxu0 %v203
  %v1134 = vpop.f32.mrf.mxu0
  %v1135 = vadd.f32 %v1122, %v1134
  %v1136 = vpop.f32.mrf.mxu0
  %1137 = vdwg.mxu0
  %1138 = vmatpush.bf16.msra.mxu0 %v757
  %1139 = vmatpush.bf16.msra.mxu0 %v753
  %1140 = vmatpush.bf16.msra.mxu0 %v749
  %1141 = vmatpush.bf16.msra.mxu0 %v745
  %1142 = vmatpush.bf16.msra.mxu0 %v741
  %1143 = vmatpush.bf16.msra.mxu0 %v737
  %1144 = vmatpush.bf16.msra.mxu0 %v733
  %1145 = vmatpush.bf16.msra.mxu0 %v729
  %1146 = vmatmul.bf16.gmra.mxu0 %v200
  %v1147 = vpop.f32.mrf.mxu0
  %v1148 = vadd.f32 %v337, %v1147
  %v1149 = vpop.f32.mrf.mxu0
  %1150 = vdwg.mxu0
  %1151 = vmatpush.bf16.msra.mxu0 %v789
  %1152 = vmatpush.bf16.msra.mxu0 %v785
  %1153 = vmatpush.bf16.msra.mxu0 %v781
  %1154 = vmatpush.bf16.msra.mxu0 %v777
  %1155 = vmatpush.bf16.msra.mxu0 %v773
  %1156 = vmatpush.bf16.msra.mxu0 %v769
  %1157 = vmatpush.bf16.msra.mxu0 %v765
  %1158 = vmatpush.bf16.msra.mxu0 %v761
  %1159 = vmatmul.bf16.gmra.mxu0 %v201
  %v1160 = vpop.f32.mrf.mxu0
  %v1161 = vadd.f32 %v1148, %v1160
  %v1162 = vpop.f32.mrf.mxu0
  %1163 = vdwg.mxu0
  %1164 = vmatpush.bf16.msra.mxu0 %v821
  %1165 = vmatpush.bf16.msra.mxu0 %v817
  %1166 = vmatpush.bf16.msra.mxu0 %v813
  %1167 = vmatpush.bf16.msra.mxu0 %v809
  %1168 = vmatpush.bf16.msra.mxu0 %v805
  %1169 = vmatpush.bf16.msra.mxu0 %v801
  %1170 = vmatpush.bf16.msra.mxu0 %v797
  %1171 = vmatpush.bf16.msra.mxu0 %v793
  %1172 = vmatmul.bf16.gmra.mxu0 %v202
  %v1173 = vpop.f32.mrf.mxu0
  %v1174 = vadd.f32 %v1161, %v1173
  %v1175 = vpop.f32.mrf.mxu0
  %1176 = vdwg.mxu0
  %1177 = vmatpush.bf16.msra.mxu0 %v853
  %1178 = vmatpush.bf16.msra.mxu0 %v849
  %1179 = vmatpush.bf16.msra.mxu0 %v845
  %1180 = vmatpush.bf16.msra.mxu0 %v841
  %1181 = vmatpush.bf16.msra.mxu0 %v837
  %1182 = vmatpush.bf16.msra.mxu0 %v833
  %1183 = vmatpush.bf16.msra.mxu0 %v829
  %1184 = vmatpush.bf16.msra.mxu0 %v825
  %1185 = vmatmul.bf16.gmra.mxu0 %v203
  %v1186 = vpop.f32.mrf.mxu0
  %v1187 = vadd.f32 %v1174, %v1186
  %v1188 = vpop.f32.mrf.mxu0
  %1189 = vdwg.mxu0
  %v1190 = vtanh.pop %v1031
  %v1191 = vtanh.pop %v1083
  %v1192 = vtanh.pop %v1135
  %v1193 = vtanh.pop %v1187
  %v1194 = vpack.c.bf16 %v1190, %v1190
  %v1195 = vpack.c.bf16 %v1191, %v1191
  %v1196 = vpack.c.bf16 %v1192, %v1192
  %v1197 = vpack.c.bf16 %v1193, %v1193
  %v1198 = vld [vmem:[%s5] sm:$0xff]
  %v1199 = vld [vmem:[%s5 + $0x8] sm:$0xff]
  %v1200 = vld [vmem:[%s5 + $0x10] sm:$0xff]
  %v1201 = vld [vmem:[%s5 + $0x18] sm:$0xff]
  %v1202 = vld [vmem:[%s5 + $0x20] sm:$0xff]
  %v1203 = vld [vmem:[%s5 + $0x28] sm:$0xff]
  %v1204 = vld [vmem:[%s5 + $0x30] sm:$0xff]
  %v1205 = vld [vmem:[%s5 + $0x38] sm:$0xff]
  %v1206 = vld [vmem:[%s5 + $0x40] sm:$0xff]
  %v1207 = vld [vmem:[%s5 + $0x48] sm:$0xff]
  %v1208 = vld [vmem:[%s5 + $0x50] sm:$0xff]
  %v1209 = vld [vmem:[%s5 + $0x58] sm:$0xff]
  %v1210 = vld [vmem:[%s5 + $0x60] sm:$0xff]
  %v1211 = vld [vmem:[%s5 + $0x68] sm:$0xff]
  %v1212 = vld [vmem:[%s5 + $0x70] sm:$0xff]
  %v1213 = vld [vmem:[%s5 + $0x78] sm:$0xff]
  %v1214 = vld [vmem:[%s5 + $0x80] sm:$0xff]
  %v1215 = vld [vmem:[%s5 + $0x88] sm:$0xff]
  %v1216 = vld [vmem:[%s5 + $0x90] sm:$0xff]
  %v1217 = vld [vmem:[%s5 + $0x98] sm:$0xff]
  %v1218 = vld [vmem:[%s5 + $0xa0] sm:$0xff]
  %v1219 = vld [vmem:[%s5 + $0xa8] sm:$0xff]
  %v1220 = vld [vmem:[%s5 + $0xb0] sm:$0xff]
  %v1221 = vld [vmem:[%s5 + $0xb8] sm:$0xff]
  %v1222 = vld [vmem:[%s5 + $0xc0] sm:$0xff]
  %v1223 = vld [vmem:[%s5 + $0xc8] sm:$0xff]
  %v1224 = vld [vmem:[%s5 + $0xd0] sm:$0xff]
  %v1225 = vld [vmem:[%s5 + $0xd8] sm:$0xff]
  %v1226 = vld [vmem:[%s5 + $0xe0] sm:$0xff]
  %v1227 = vld [vmem:[%s5 + $0xe8] sm:$0xff]
  %v1228 = vld [vmem:[%s5 + $0xf0] sm:$0xff]
  %v1229 = vld [vmem:[%s5 + $0xf8] sm:$0xff]
  %v1230 = vld [vmem:[%s5 + $0x100] sm:$0xff]
  %v1231 = vld [vmem:[%s5 + $0x108] sm:$0xff]
  %v1232 = vld [vmem:[%s5 + $0x110] sm:$0xff]
  %v1233 = vld [vmem:[%s5 + $0x118] sm:$0xff]
  %v1234 = vld [vmem:[%s5 + $0x120] sm:$0xff]
  %v1235 = vld [vmem:[%s5 + $0x128] sm:$0xff]
  %v1236 = vld [vmem:[%s5 + $0x130] sm:$0xff]
  %v1237 = vld [vmem:[%s5 + $0x138] sm:$0xff]
  %v1238 = vld [vmem:[%s5 + $0x140] sm:$0xff]
  %v1239 = vld [vmem:[%s5 + $0x148] sm:$0xff]
  %v1240 = vld [vmem:[%s5 + $0x150] sm:$0xff]
  %v1241 = vld [vmem:[%s5 + $0x158] sm:$0xff]
  %v1242 = vld [vmem:[%s5 + $0x160] sm:$0xff]
  %v1243 = vld [vmem:[%s5 + $0x168] sm:$0xff]
  %v1244 = vld [vmem:[%s5 + $0x170] sm:$0xff]
  %v1245 = vld [vmem:[%s5 + $0x178] sm:$0xff]
  %v1246 = vld [vmem:[%s5 + $0x180] sm:$0xff]
  %v1247 = vld [vmem:[%s5 + $0x188] sm:$0xff]
  %v1248 = vld [vmem:[%s5 + $0x190] sm:$0xff]
  %v1249 = vld [vmem:[%s5 + $0x198] sm:$0xff]
  %v1250 = vld [vmem:[%s5 + $0x1a0] sm:$0xff]
  %v1251 = vld [vmem:[%s5 + $0x1a8] sm:$0xff]
  %v1252 = vld [vmem:[%s5 + $0x1b0] sm:$0xff]
  %v1253 = vld [vmem:[%s5 + $0x1b8] sm:$0xff]
  %v1254 = vld [vmem:[%s5 + $0x1c0] sm:$0xff]
  %v1255 = vld [vmem:[%s5 + $0x1c8] sm:$0xff]
  %v1256 = vld [vmem:[%s5 + $0x1d0] sm:$0xff]
  %v1257 = vld [vmem:[%s5 + $0x1d8] sm:$0xff]
  %v1258 = vld [vmem:[%s5 + $0x1e0] sm:$0xff]
  %v1259 = vld [vmem:[%s5 + $0x1e8] sm:$0xff]
  %v1260 = vld [vmem:[%s5 + $0x1f0] sm:$0xff]
  %v1261 = vld [vmem:[%s5 + $0x1f8] sm:$0xff]
  %v1262 = vld [vmem:[%s5 + $0x200] sm:$0xff]
  %v1263 = vld [vmem:[%s5 + $0x208] sm:$0xff]
  %v1264 = vld [vmem:[%s5 + $0x210] sm:$0xff]
  %v1265 = vld [vmem:[%s5 + $0x218] sm:$0xff]
  %v1266 = vld [vmem:[%s5 + $0x220] sm:$0xff]
  %v1267 = vld [vmem:[%s5 + $0x228] sm:$0xff]
  %v1268 = vld [vmem:[%s5 + $0x230] sm:$0xff]
  %v1269 = vld [vmem:[%s5 + $0x238] sm:$0xff]
  %v1270 = vld [vmem:[%s5 + $0x240] sm:$0xff]
  %v1271 = vld [vmem:[%s5 + $0x248] sm:$0xff]
  %v1272 = vld [vmem:[%s5 + $0x250] sm:$0xff]
  %v1273 = vld [vmem:[%s5 + $0x258] sm:$0xff]
  %v1274 = vld [vmem:[%s5 + $0x260] sm:$0xff]
  %v1275 = vld [vmem:[%s5 + $0x268] sm:$0xff]
  %v1276 = vld [vmem:[%s5 + $0x270] sm:$0xff]
  %v1277 = vld [vmem:[%s5 + $0x278] sm:$0xff]
  %v1278 = vld [vmem:[%s5 + $0x280] sm:$0xff]
  %v1279 = vld [vmem:[%s5 + $0x288] sm:$0xff]
  %v1280 = vld [vmem:[%s5 + $0x290] sm:$0xff]
  %v1281 = vld [vmem:[%s5 + $0x298] sm:$0xff]
  %v1282 = vld [vmem:[%s5 + $0x2a0] sm:$0xff]
  %v1283 = vld [vmem:[%s5 + $0x2a8] sm:$0xff]
  %v1284 = vld [vmem:[%s5 + $0x2b0] sm:$0xff]
  %v1285 = vld [vmem:[%s5 + $0x2b8] sm:$0xff]
  %v1286 = vld [vmem:[%s5 + $0x2c0] sm:$0xff]
  %v1287 = vld [vmem:[%s5 + $0x2c8] sm:$0xff]
  %v1288 = vld [vmem:[%s5 + $0x2d0] sm:$0xff]
  %v1289 = vld [vmem:[%s5 + $0x2d8] sm:$0xff]
  %v1290 = vld [vmem:[%s5 + $0x2e0] sm:$0xff]
  %v1291 = vld [vmem:[%s5 + $0x2e8] sm:$0xff]
  %v1292 = vld [vmem:[%s5 + $0x2f0] sm:$0xff]
  %v1293 = vld [vmem:[%s5 + $0x2f8] sm:$0xff]
  %v1294 = vld [vmem:[%s5 + $0x300] sm:$0xff]
  %v1295 = vld [vmem:[%s5 + $0x308] sm:$0xff]
  %v1296 = vld [vmem:[%s5 + $0x310] sm:$0xff]
  %v1297 = vld [vmem:[%s5 + $0x318] sm:$0xff]
  %v1298 = vld [vmem:[%s5 + $0x320] sm:$0xff]
  %v1299 = vld [vmem:[%s5 + $0x328] sm:$0xff]
  %v1300 = vld [vmem:[%s5 + $0x330] sm:$0xff]
  %v1301 = vld [vmem:[%s5 + $0x338] sm:$0xff]
  %v1302 = vld [vmem:[%s5 + $0x340] sm:$0xff]
  %v1303 = vld [vmem:[%s5 + $0x348] sm:$0xff]
  %v1304 = vld [vmem:[%s5 + $0x350] sm:$0xff]
  %v1305 = vld [vmem:[%s5 + $0x358] sm:$0xff]
  %v1306 = vld [vmem:[%s5 + $0x360] sm:$0xff]
  %v1307 = vld [vmem:[%s5 + $0x368] sm:$0xff]
  %v1308 = vld [vmem:[%s5 + $0x370] sm:$0xff]
  %v1309 = vld [vmem:[%s5 + $0x378] sm:$0xff]
  %v1310 = vld [vmem:[%s5 + $0x380] sm:$0xff]
  %v1311 = vld [vmem:[%s5 + $0x388] sm:$0xff]
  %v1312 = vld [vmem:[%s5 + $0x390] sm:$0xff]
  %v1313 = vld [vmem:[%s5 + $0x398] sm:$0xff]
  %v1314 = vld [vmem:[%s5 + $0x3a0] sm:$0xff]
  %v1315 = vld [vmem:[%s5 + $0x3a8] sm:$0xff]
  %v1316 = vld [vmem:[%s5 + $0x3b0] sm:$0xff]
  %v1317 = vld [vmem:[%s5 + $0x3b8] sm:$0xff]
  %v1318 = vld [vmem:[%s5 + $0x3c0] sm:$0xff]
  %v1319 = vld [vmem:[%s5 + $0x3c8] sm:$0xff]
  %v1320 = vld [vmem:[%s5 + $0x3d0] sm:$0xff]
  %v1321 = vld [vmem:[%s5 + $0x3d8] sm:$0xff]
  %v1322 = vld [vmem:[%s5 + $0x3e0] sm:$0xff]
  %v1323 = vld [vmem:[%s5 + $0x3e8] sm:$0xff]
  %v1324 = vld [vmem:[%s5 + $0x3f0] sm:$0xff]
  %v1325 = vld [vmem:[%s5 + $0x3f8] sm:$0xff]
  %v1326 = vld [vmem:[%s6] sm:$0xf]
  %v1328 = vperm.slane %v1326, 0
  %v1329 = vperm.slane %v1326, 1
  %v1330 = vperm.slane %v1326, 2
  %v1331 = vperm.slane %v1326, 3
  %v1464 = vunpack.c.l.b16 %v1198
  %v1465 = vunpack.c.h.b16 %v1198
  %v1466 = vunpack.c.l.b16 %v1199
  %v1467 = vunpack.c.h.b16 %v1199
  %v1468 = vunpack.c.l.b16 %v1200
  %v1469 = vunpack.c.h.b16 %v1200
  %v1470 = vunpack.c.l.b16 %v1201
  %v1471 = vunpack.c.h.b16 %v1201
  %v1472 = vunpack.c.l.b16 %v1202
  %v1473 = vunpack.c.h.b16 %v1202
  %v1474 = vunpack.c.l.b16 %v1203
  %v1475 = vunpack.c.h.b16 %v1203
  %v1476 = vunpack.c.l.b16 %v1204
  %v1477 = vunpack.c.h.b16 %v1204
  %v1478 = vunpack.c.l.b16 %v1205
  %v1479 = vunpack.c.h.b16 %v1205
  %v1480 = vunpack.c.l.b16 %v1206
  %v1481 = vunpack.c.h.b16 %v1206
  %v1482 = vunpack.c.l.b16 %v1207
  %v1483 = vunpack.c.h.b16 %v1207
  %v1484 = vunpack.c.l.b16 %v1208
  %v1485 = vunpack.c.h.b16 %v1208
  %v1486 = vunpack.c.l.b16 %v1209
  %v1487 = vunpack.c.h.b16 %v1209
  %v1488 = vunpack.c.l.b16 %v1210
  %v1489 = vunpack.c.h.b16 %v1210
  %v1490 = vunpack.c.l.b16 %v1211
  %v1491 = vunpack.c.h.b16 %v1211
  %v1492 = vunpack.c.l.b16 %v1212
  %v1493 = vunpack.c.h.b16 %v1212
  %v1494 = vunpack.c.l.b16 %v1213
  %v1495 = vunpack.c.h.b16 %v1213
  %v1496 = vunpack.c.l.b16 %v1214
  %v1497 = vunpack.c.h.b16 %v1214
  %v1498 = vunpack.c.l.b16 %v1215
  %v1499 = vunpack.c.h.b16 %v1215
  %v1500 = vunpack.c.l.b16 %v1216
  %v1501 = vunpack.c.h.b16 %v1216
  %v1502 = vunpack.c.l.b16 %v1217
  %v1503 = vunpack.c.h.b16 %v1217
  %v1504 = vunpack.c.l.b16 %v1218
  %v1505 = vunpack.c.h.b16 %v1218
  %v1506 = vunpack.c.l.b16 %v1219
  %v1507 = vunpack.c.h.b16 %v1219
  %v1508 = vunpack.c.l.b16 %v1220
  %v1509 = vunpack.c.h.b16 %v1220
  %v1510 = vunpack.c.l.b16 %v1221
  %v1511 = vunpack.c.h.b16 %v1221
  %v1512 = vunpack.c.l.b16 %v1222
  %v1513 = vunpack.c.h.b16 %v1222
  %v1514 = vunpack.c.l.b16 %v1223
  %v1515 = vunpack.c.h.b16 %v1223
  %v1516 = vunpack.c.l.b16 %v1224
  %v1517 = vunpack.c.h.b16 %v1224
  %v1518 = vunpack.c.l.b16 %v1225
  %v1519 = vunpack.c.h.b16 %v1225
  %v1520 = vunpack.c.l.b16 %v1226
  %v1521 = vunpack.c.h.b16 %v1226
  %v1522 = vunpack.c.l.b16 %v1227
  %v1523 = vunpack.c.h.b16 %v1227
  %v1524 = vunpack.c.l.b16 %v1228
  %v1525 = vunpack.c.h.b16 %v1228
  %v1526 = vunpack.c.l.b16 %v1229
  %v1527 = vunpack.c.h.b16 %v1229
  %v1528 = vunpack.c.l.b16 %v1230
  %v1529 = vunpack.c.h.b16 %v1230
  %v1530 = vunpack.c.l.b16 %v1231
  %v1531 = vunpack.c.h.b16 %v1231
  %v1532 = vunpack.c.l.b16 %v1232
  %v1533 = vunpack.c.h.b16 %v1232
  %v1534 = vunpack.c.l.b16 %v1233
  %v1535 = vunpack.c.h.b16 %v1233
  %v1536 = vunpack.c.l.b16 %v1234
  %v1537 = vunpack.c.h.b16 %v1234
  %v1538 = vunpack.c.l.b16 %v1235
  %v1539 = vunpack.c.h.b16 %v1235
  %v1540 = vunpack.c.l.b16 %v1236
  %v1541 = vunpack.c.h.b16 %v1236
  %v1542 = vunpack.c.l.b16 %v1237
  %v1543 = vunpack.c.h.b16 %v1237
  %v1544 = vunpack.c.l.b16 %v1238
  %v1545 = vunpack.c.h.b16 %v1238
  %v1546 = vunpack.c.l.b16 %v1239
  %v1547 = vunpack.c.h.b16 %v1239
  %v1548 = vunpack.c.l.b16 %v1240
  %v1549 = vunpack.c.h.b16 %v1240
  %v1550 = vunpack.c.l.b16 %v1241
  %v1551 = vunpack.c.h.b16 %v1241
  %v1552 = vunpack.c.l.b16 %v1242
  %v1553 = vunpack.c.h.b16 %v1242
  %v1554 = vunpack.c.l.b16 %v1243
  %v1555 = vunpack.c.h.b16 %v1243
  %v1556 = vunpack.c.l.b16 %v1244
  %v1557 = vunpack.c.h.b16 %v1244
  %v1558 = vunpack.c.l.b16 %v1245
  %v1559 = vunpack.c.h.b16 %v1245
  %v1560 = vunpack.c.l.b16 %v1246
  %v1561 = vunpack.c.h.b16 %v1246
  %v1562 = vunpack.c.l.b16 %v1247
  %v1563 = vunpack.c.h.b16 %v1247
  %v1564 = vunpack.c.l.b16 %v1248
  %v1565 = vunpack.c.h.b16 %v1248
  %v1566 = vunpack.c.l.b16 %v1249
  %v1567 = vunpack.c.h.b16 %v1249
  %v1568 = vunpack.c.l.b16 %v1250
  %v1569 = vunpack.c.h.b16 %v1250
  %v1570 = vunpack.c.l.b16 %v1251
  %v1571 = vunpack.c.h.b16 %v1251
  %v1572 = vunpack.c.l.b16 %v1252
  %v1573 = vunpack.c.h.b16 %v1252
  %v1574 = vunpack.c.l.b16 %v1253
  %v1575 = vunpack.c.h.b16 %v1253
  %v1576 = vunpack.c.l.b16 %v1254
  %v1577 = vunpack.c.h.b16 %v1254
  %v1578 = vunpack.c.l.b16 %v1255
  %v1579 = vunpack.c.h.b16 %v1255
  %v1580 = vunpack.c.l.b16 %v1256
  %v1581 = vunpack.c.h.b16 %v1256
  %v1582 = vunpack.c.l.b16 %v1257
  %v1583 = vunpack.c.h.b16 %v1257
  %v1584 = vunpack.c.l.b16 %v1258
  %v1585 = vunpack.c.h.b16 %v1258
  %v1586 = vunpack.c.l.b16 %v1259
  %v1587 = vunpack.c.h.b16 %v1259
  %v1588 = vunpack.c.l.b16 %v1260
  %v1589 = vunpack.c.h.b16 %v1260
  %v1590 = vunpack.c.l.b16 %v1261
  %v1591 = vunpack.c.h.b16 %v1261
  %v1592 = vunpack.c.l.b16 %v1262
  %v1593 = vunpack.c.h.b16 %v1262
  %v1594 = vunpack.c.l.b16 %v1263
  %v1595 = vunpack.c.h.b16 %v1263
  %v1596 = vunpack.c.l.b16 %v1264
  %v1597 = vunpack.c.h.b16 %v1264
  %v1598 = vunpack.c.l.b16 %v1265
  %v1599 = vunpack.c.h.b16 %v1265
  %v1600 = vunpack.c.l.b16 %v1266
  %v1601 = vunpack.c.h.b16 %v1266
  %v1602 = vunpack.c.l.b16 %v1267
  %v1603 = vunpack.c.h.b16 %v1267
  %v1604 = vunpack.c.l.b16 %v1268
  %v1605 = vunpack.c.h.b16 %v1268
  %v1606 = vunpack.c.l.b16 %v1269
  %v1607 = vunpack.c.h.b16 %v1269
  %v1608 = vunpack.c.l.b16 %v1270
  %v1609 = vunpack.c.h.b16 %v1270
  %v1610 = vunpack.c.l.b16 %v1271
  %v1611 = vunpack.c.h.b16 %v1271
  %v1612 = vunpack.c.l.b16 %v1272
  %v1613 = vunpack.c.h.b16 %v1272
  %v1614 = vunpack.c.l.b16 %v1273
  %v1615 = vunpack.c.h.b16 %v1273
  %v1616 = vunpack.c.l.b16 %v1274
  %v1617 = vunpack.c.h.b16 %v1274
  %v1618 = vunpack.c.l.b16 %v1275
  %v1619 = vunpack.c.h.b16 %v1275
  %v1620 = vunpack.c.l.b16 %v1276
  %v1621 = vunpack.c.h.b16 %v1276
  %v1622 = vunpack.c.l.b16 %v1277
  %v1623 = vunpack.c.h.b16 %v1277
  %v1624 = vunpack.c.l.b16 %v1278
  %v1625 = vunpack.c.h.b16 %v1278
  %v1626 = vunpack.c.l.b16 %v1279
  %v1627 = vunpack.c.h.b16 %v1279
  %v1628 = vunpack.c.l.b16 %v1280
  %v1629 = vunpack.c.h.b16 %v1280
  %v1630 = vunpack.c.l.b16 %v1281
  %v1631 = vunpack.c.h.b16 %v1281
  %v1632 = vunpack.c.l.b16 %v1282
  %v1633 = vunpack.c.h.b16 %v1282
  %v1634 = vunpack.c.l.b16 %v1283
  %v1635 = vunpack.c.h.b16 %v1283
  %v1636 = vunpack.c.l.b16 %v1284
  %v1637 = vunpack.c.h.b16 %v1284
  %v1638 = vunpack.c.l.b16 %v1285
  %v1639 = vunpack.c.h.b16 %v1285
  %v1640 = vunpack.c.l.b16 %v1286
  %v1641 = vunpack.c.h.b16 %v1286
  %v1642 = vunpack.c.l.b16 %v1287
  %v1643 = vunpack.c.h.b16 %v1287
  %v1644 = vunpack.c.l.b16 %v1288
  %v1645 = vunpack.c.h.b16 %v1288
  %v1646 = vunpack.c.l.b16 %v1289
  %v1647 = vunpack.c.h.b16 %v1289
  %v1648 = vunpack.c.l.b16 %v1290
  %v1649 = vunpack.c.h.b16 %v1290
  %v1650 = vunpack.c.l.b16 %v1291
  %v1651 = vunpack.c.h.b16 %v1291
  %v1652 = vunpack.c.l.b16 %v1292
  %v1653 = vunpack.c.h.b16 %v1292
  %v1654 = vunpack.c.l.b16 %v1293
  %v1655 = vunpack.c.h.b16 %v1293
  %v1656 = vunpack.c.l.b16 %v1294
  %v1657 = vunpack.c.h.b16 %v1294
  %v1658 = vunpack.c.l.b16 %v1295
  %v1659 = vunpack.c.h.b16 %v1295
  %v1660 = vunpack.c.l.b16 %v1296
  %v1661 = vunpack.c.h.b16 %v1296
  %v1662 = vunpack.c.l.b16 %v1297
  %v1663 = vunpack.c.h.b16 %v1297
  %v1664 = vunpack.c.l.b16 %v1298
  %v1665 = vunpack.c.h.b16 %v1298
  %v1666 = vunpack.c.l.b16 %v1299
  %v1667 = vunpack.c.h.b16 %v1299
  %v1668 = vunpack.c.l.b16 %v1300
  %v1669 = vunpack.c.h.b16 %v1300
  %v1670 = vunpack.c.l.b16 %v1301
  %v1671 = vunpack.c.h.b16 %v1301
  %v1672 = vunpack.c.l.b16 %v1302
  %v1673 = vunpack.c.h.b16 %v1302
  %v1674 = vunpack.c.l.b16 %v1303
  %v1675 = vunpack.c.h.b16 %v1303
  %v1676 = vunpack.c.l.b16 %v1304
  %v1677 = vunpack.c.h.b16 %v1304
  %v1678 = vunpack.c.l.b16 %v1305
  %v1679 = vunpack.c.h.b16 %v1305
  %v1680 = vunpack.c.l.b16 %v1306
  %v1681 = vunpack.c.h.b16 %v1306
  %v1682 = vunpack.c.l.b16 %v1307
  %v1683 = vunpack.c.h.b16 %v1307
  %v1684 = vunpack.c.l.b16 %v1308
  %v1685 = vunpack.c.h.b16 %v1308
  %v1686 = vunpack.c.l.b16 %v1309
  %v1687 = vunpack.c.h.b16 %v1309
  %v1688 = vunpack.c.l.b16 %v1310
  %v1689 = vunpack.c.h.b16 %v1310
  %v1690 = vunpack.c.l.b16 %v1311
  %v1691 = vunpack.c.h.b16 %v1311
  %v1692 = vunpack.c.l.b16 %v1312
  %v1693 = vunpack.c.h.b16 %v1312
  %v1694 = vunpack.c.l.b16 %v1313
  %v1695 = vunpack.c.h.b16 %v1313
  %v1696 = vunpack.c.l.b16 %v1314
  %v1697 = vunpack.c.h.b16 %v1314
  %v1698 = vunpack.c.l.b16 %v1315
  %v1699 = vunpack.c.h.b16 %v1315
  %v1700 = vunpack.c.l.b16 %v1316
  %v1701 = vunpack.c.h.b16 %v1316
  %v1702 = vunpack.c.l.b16 %v1317
  %v1703 = vunpack.c.h.b16 %v1317
  %v1704 = vunpack.c.l.b16 %v1318
  %v1705 = vunpack.c.h.b16 %v1318
  %v1706 = vunpack.c.l.b16 %v1319
  %v1707 = vunpack.c.h.b16 %v1319
  %v1708 = vunpack.c.l.b16 %v1320
  %v1709 = vunpack.c.h.b16 %v1320
  %v1710 = vunpack.c.l.b16 %v1321
  %v1711 = vunpack.c.h.b16 %v1321
  %v1712 = vunpack.c.l.b16 %v1322
  %v1713 = vunpack.c.h.b16 %v1322
  %v1714 = vunpack.c.l.b16 %v1323
  %v1715 = vunpack.c.h.b16 %v1323
  %v1716 = vunpack.c.l.b16 %v1324
  %v1717 = vunpack.c.h.b16 %v1324
  %v1718 = vunpack.c.l.b16 %v1325
  %v1719 = vunpack.c.h.b16 %v1325
  %v1720 = vpack.c.b16 %v1468, %v1464
  %v1721 = vpack.c.b16 %v1469, %v1465
  %v1722 = vpack.c.b16 %v1470, %v1466
  %v1723 = vpack.c.b16 %v1471, %v1467
  %v1724 = vpack.c.b16 %v1476, %v1472
  %v1725 = vpack.c.b16 %v1477, %v1473
  %v1726 = vpack.c.b16 %v1478, %v1474
  %v1727 = vpack.c.b16 %v1479, %v1475
  %v1728 = vpack.c.b16 %v1484, %v1480
  %v1729 = vpack.c.b16 %v1485, %v1481
  %v1730 = vpack.c.b16 %v1486, %v1482
  %v1731 = vpack.c.b16 %v1487, %v1483
  %v1732 = vpack.c.b16 %v1492, %v1488
  %v1733 = vpack.c.b16 %v1493, %v1489
  %v1734 = vpack.c.b16 %v1494, %v1490
  %v1735 = vpack.c.b16 %v1495, %v1491
  %v1736 = vpack.c.b16 %v1500, %v1496
  %v1737 = vpack.c.b16 %v1501, %v1497
  %v1738 = vpack.c.b16 %v1502, %v1498
  %v1739 = vpack.c.b16 %v1503, %v1499
  %v1740 = vpack.c.b16 %v1508, %v1504
  %v1741 = vpack.c.b16 %v1509, %v1505
  %v1742 = vpack.c.b16 %v1510, %v1506
  %v1743 = vpack.c.b16 %v1511, %v1507
  %v1744 = vpack.c.b16 %v1516, %v1512
  %v1745 = vpack.c.b16 %v1517, %v1513
  %v1746 = vpack.c.b16 %v1518, %v1514
  %v1747 = vpack.c.b16 %v1519, %v1515
  %v1748 = vpack.c.b16 %v1524, %v1520
  %v1749 = vpack.c.b16 %v1525, %v1521
  %v1750 = vpack.c.b16 %v1526, %v1522
  %v1751 = vpack.c.b16 %v1527, %v1523
  %v1752 = vpack.c.b16 %v1532, %v1528
  %v1753 = vpack.c.b16 %v1533, %v1529
  %v1754 = vpack.c.b16 %v1534, %v1530
  %v1755 = vpack.c.b16 %v1535, %v1531
  %v1756 = vpack.c.b16 %v1540, %v1536
  %v1757 = vpack.c.b16 %v1541, %v1537
  %v1758 = vpack.c.b16 %v1542, %v1538
  %v1759 = vpack.c.b16 %v1543, %v1539
  %v1760 = vpack.c.b16 %v1548, %v1544
  %v1761 = vpack.c.b16 %v1549, %v1545
  %v1762 = vpack.c.b16 %v1550, %v1546
  %v1763 = vpack.c.b16 %v1551, %v1547
  %v1764 = vpack.c.b16 %v1556, %v1552
  %v1765 = vpack.c.b16 %v1557, %v1553
  %v1766 = vpack.c.b16 %v1558, %v1554
  %v1767 = vpack.c.b16 %v1559, %v1555
  %v1768 = vpack.c.b16 %v1564, %v1560
  %v1769 = vpack.c.b16 %v1565, %v1561
  %v1770 = vpack.c.b16 %v1566, %v1562
  %v1771 = vpack.c.b16 %v1567, %v1563
  %v1772 = vpack.c.b16 %v1572, %v1568
  %v1773 = vpack.c.b16 %v1573, %v1569
  %v1774 = vpack.c.b16 %v1574, %v1570
  %v1775 = vpack.c.b16 %v1575, %v1571
  %v1776 = vpack.c.b16 %v1580, %v1576
  %v1777 = vpack.c.b16 %v1581, %v1577
  %v1778 = vpack.c.b16 %v1582, %v1578
  %v1779 = vpack.c.b16 %v1583, %v1579
  %v1780 = vpack.c.b16 %v1588, %v1584
  %v1781 = vpack.c.b16 %v1589, %v1585
  %v1782 = vpack.c.b16 %v1590, %v1586
  %v1783 = vpack.c.b16 %v1591, %v1587
  %v1784 = vpack.c.b16 %v1596, %v1592
  %v1785 = vpack.c.b16 %v1597, %v1593
  %v1786 = vpack.c.b16 %v1598, %v1594
  %v1787 = vpack.c.b16 %v1599, %v1595
  %v1788 = vpack.c.b16 %v1604, %v1600
  %v1789 = vpack.c.b16 %v1605, %v1601
  %v1790 = vpack.c.b16 %v1606, %v1602
  %v1791 = vpack.c.b16 %v1607, %v1603
  %v1792 = vpack.c.b16 %v1612, %v1608
  %v1793 = vpack.c.b16 %v1613, %v1609
  %v1794 = vpack.c.b16 %v1614, %v1610
  %v1795 = vpack.c.b16 %v1615, %v1611
  %v1796 = vpack.c.b16 %v1620, %v1616
  %v1797 = vpack.c.b16 %v1621, %v1617
  %v1798 = vpack.c.b16 %v1622, %v1618
  %v1799 = vpack.c.b16 %v1623, %v1619
  %v1800 = vpack.c.b16 %v1628, %v1624
  %v1801 = vpack.c.b16 %v1629, %v1625
  %v1802 = vpack.c.b16 %v1630, %v1626
  %v1803 = vpack.c.b16 %v1631, %v1627
  %v1804 = vpack.c.b16 %v1636, %v1632
  %v1805 = vpack.c.b16 %v1637, %v1633
  %v1806 = vpack.c.b16 %v1638, %v1634
  %v1807 = vpack.c.b16 %v1639, %v1635
  %v1808 = vpack.c.b16 %v1644, %v1640
  %v1809 = vpack.c.b16 %v1645, %v1641
  %v1810 = vpack.c.b16 %v1646, %v1642
  %v1811 = vpack.c.b16 %v1647, %v1643
  %v1812 = vpack.c.b16 %v1652, %v1648
  %v1813 = vpack.c.b16 %v1653, %v1649
  %v1814 = vpack.c.b16 %v1654, %v1650
  %v1815 = vpack.c.b16 %v1655, %v1651
  %v1816 = vpack.c.b16 %v1660, %v1656
  %v1817 = vpack.c.b16 %v1661, %v1657
  %v1818 = vpack.c.b16 %v1662, %v1658
  %v1819 = vpack.c.b16 %v1663, %v1659
  %v1820 = vpack.c.b16 %v1668, %v1664
  %v1821 = vpack.c.b16 %v1669, %v1665
  %v1822 = vpack.c.b16 %v1670, %v1666
  %v1823 = vpack.c.b16 %v1671, %v1667
  %v1824 = vpack.c.b16 %v1676, %v1672
  %v1825 = vpack.c.b16 %v1677, %v1673
  %v1826 = vpack.c.b16 %v1678, %v1674
  %v1827 = vpack.c.b16 %v1679, %v1675
  %v1828 = vpack.c.b16 %v1684, %v1680
  %v1829 = vpack.c.b16 %v1685, %v1681
  %v1830 = vpack.c.b16 %v1686, %v1682
  %v1831 = vpack.c.b16 %v1687, %v1683
  %v1832 = vpack.c.b16 %v1692, %v1688
  %v1833 = vpack.c.b16 %v1693, %v1689
  %v1834 = vpack.c.b16 %v1694, %v1690
  %v1835 = vpack.c.b16 %v1695, %v1691
  %v1836 = vpack.c.b16 %v1700, %v1696
  %v1837 = vpack.c.b16 %v1701, %v1697
  %v1838 = vpack.c.b16 %v1702, %v1698
  %v1839 = vpack.c.b16 %v1703, %v1699
  %v1840 = vpack.c.b16 %v1708, %v1704
  %v1841 = vpack.c.b16 %v1709, %v1705
  %v1842 = vpack.c.b16 %v1710, %v1706
  %v1843 = vpack.c.b16 %v1711, %v1707
  %v1844 = vpack.c.b16 %v1716, %v1712
  %v1845 = vpack.c.b16 %v1717, %v1713
  %v1846 = vpack.c.b16 %v1718, %v1714
  %v1847 = vpack.c.b16 %v1719, %v1715
  %1976 = vmatpush.bf16.msra.mxu0 %v1748
  %1977 = vmatpush.bf16.msra.mxu0 %v1744
  %1978 = vmatpush.bf16.msra.mxu0 %v1740
  %1979 = vmatpush.bf16.msra.mxu0 %v1736
  %1980 = vmatpush.bf16.msra.mxu0 %v1732
  %1981 = vmatpush.bf16.msra.mxu0 %v1728
  %1982 = vmatpush.bf16.msra.mxu0 %v1724
  %1983 = vmatpush.bf16.msra.mxu0 %v1720
  %1984 = vmatmul.bf16.gmra.mxu0 %v1194
  %v1985 = vpop.f32.mrf.mxu0
  %v1986 = vadd.f32 %v1328, %v1985
  %v1987 = vpop.f32.mrf.mxu0
  %1988 = vdwg.mxu0
  %1989 = vmatpush.bf16.msra.mxu0 %v1780
  %1990 = vmatpush.bf16.msra.mxu0 %v1776
  %1991 = vmatpush.bf16.msra.mxu0 %v1772
  %1992 = vmatpush.bf16.msra.mxu0 %v1768
  %1993 = vmatpush.bf16.msra.mxu0 %v1764
  %1994 = vmatpush.bf16.msra.mxu0 %v1760
  %1995 = vmatpush.bf16.msra.mxu0 %v1756
  %1996 = vmatpush.bf16.msra.mxu0 %v1752
  %1997 = vmatmul.bf16.gmra.mxu0 %v1195
  %v1998 = vpop.f32.mrf.mxu0
  %v1999 = vadd.f32 %v1986, %v1998
  %v2000 = vpop.f32.mrf.mxu0
  %2001 = vdwg.mxu0
  %2002 = vmatpush.bf16.msra.mxu0 %v1812
  %2003 = vmatpush.bf16.msra.mxu0 %v1808
  %2004 = vmatpush.bf16.msra.mxu0 %v1804
  %2005 = vmatpush.bf16.msra.mxu0 %v1800
  %2006 = vmatpush.bf16.msra.mxu0 %v1796
  %2007 = vmatpush.bf16.msra.mxu0 %v1792
  %2008 = vmatpush.bf16.msra.mxu0 %v1788
  %2009 = vmatpush.bf16.msra.mxu0 %v1784
  %2010 = vmatmul.bf16.gmra.mxu0 %v1196
  %v2011 = vpop.f32.mrf.mxu0
  %v2012 = vadd.f32 %v1999, %v2011
  %v2013 = vpop.f32.mrf.mxu0
  %2014 = vdwg.mxu0
  %2015 = vmatpush.bf16.msra.mxu0 %v1844
  %2016 = vmatpush.bf16.msra.mxu0 %v1840
  %2017 = vmatpush.bf16.msra.mxu0 %v1836
  %2018 = vmatpush.bf16.msra.mxu0 %v1832
  %2019 = vmatpush.bf16.msra.mxu0 %v1828
  %2020 = vmatpush.bf16.msra.mxu0 %v1824
  %2021 = vmatpush.bf16.msra.mxu0 %v1820
  %2022 = vmatpush.bf16.msra.mxu0 %v1816
  %2023 = vmatmul.bf16.gmra.mxu0 %v1197
  %v2024 = vpop.f32.mrf.mxu0
  %v2025 = vadd.f32 %v2012, %v2024
  %v2026 = vpop.f32.mrf.mxu0
  %2027 = vdwg.mxu0
  %2028 = vmatpush.bf16.msra.mxu0 %v1749
  %2029 = vmatpush.bf16.msra.mxu0 %v1745
  %2030 = vmatpush.bf16.msra.mxu0 %v1741
  %2031 = vmatpush.bf16.msra.mxu0 %v1737
  %2032 = vmatpush.bf16.msra.mxu0 %v1733
  %2033 = vmatpush.bf16.msra.mxu0 %v1729
  %2034 = vmatpush.bf16.msra.mxu0 %v1725
  %2035 = vmatpush.bf16.msra.mxu0 %v1721
  %2036 = vmatmul.bf16.gmra.mxu0 %v1194
  %v2037 = vpop.f32.mrf.mxu0
  %v2038 = vadd.f32 %v1329, %v2037
  %v2039 = vpop.f32.mrf.mxu0
  %2040 = vdwg.mxu0
  %2041 = vmatpush.bf16.msra.mxu0 %v1781
  %2042 = vmatpush.bf16.msra.mxu0 %v1777
  %2043 = vmatpush.bf16.msra.mxu0 %v1773
  %2044 = vmatpush.bf16.msra.mxu0 %v1769
  %2045 = vmatpush.bf16.msra.mxu0 %v1765
  %2046 = vmatpush.bf16.msra.mxu0 %v1761
  %2047 = vmatpush.bf16.msra.mxu0 %v1757
  %2048 = vmatpush.bf16.msra.mxu0 %v1753
  %2049 = vmatmul.bf16.gmra.mxu0 %v1195
  %v2050 = vpop.f32.mrf.mxu0
  %v2051 = vadd.f32 %v2038, %v2050
  %v2052 = vpop.f32.mrf.mxu0
  %2053 = vdwg.mxu0
  %2054 = vmatpush.bf16.msra.mxu0 %v1813
  %2055 = vmatpush.bf16.msra.mxu0 %v1809
  %2056 = vmatpush.bf16.msra.mxu0 %v1805
  %2057 = vmatpush.bf16.msra.mxu0 %v1801
  %2058 = vmatpush.bf16.msra.mxu0 %v1797
  %2059 = vmatpush.bf16.msra.mxu0 %v1793
  %2060 = vmatpush.bf16.msra.mxu0 %v1789
  %2061 = vmatpush.bf16.msra.mxu0 %v1785
  %2062 = vmatmul.bf16.gmra.mxu0 %v1196
  %v2063 = vpop.f32.mrf.mxu0
  %v2064 = vadd.f32 %v2051, %v2063
  %v2065 = vpop.f32.mrf.mxu0
  %2066 = vdwg.mxu0
  %2067 = vmatpush.bf16.msra.mxu0 %v1845
  %2068 = vmatpush.bf16.msra.mxu0 %v1841
  %2069 = vmatpush.bf16.msra.mxu0 %v1837
  %2070 = vmatpush.bf16.msra.mxu0 %v1833
  %2071 = vmatpush.bf16.msra.mxu0 %v1829
  %2072 = vmatpush.bf16.msra.mxu0 %v1825
  %2073 = vmatpush.bf16.msra.mxu0 %v1821
  %2074 = vmatpush.bf16.msra.mxu0 %v1817
  %2075 = vmatmul.bf16.gmra.mxu0 %v1197
  %v2076 = vpop.f32.mrf.mxu0
  %v2077 = vadd.f32 %v2064, %v2076
  %v2078 = vpop.f32.mrf.mxu0
  %2079 = vdwg.mxu0
  %2080 = vmatpush.bf16.msra.mxu0 %v1750
  %2081 = vmatpush.bf16.msra.mxu0 %v1746
  %2082 = vmatpush.bf16.msra.mxu0 %v1742
  %2083 = vmatpush.bf16.msra.mxu0 %v1738
  %2084 = vmatpush.bf16.msra.mxu0 %v1734
  %2085 = vmatpush.bf16.msra.mxu0 %v1730
  %2086 = vmatpush.bf16.msra.mxu0 %v1726
  %2087 = vmatpush.bf16.msra.mxu0 %v1722
  %2088 = vmatmul.bf16.gmra.mxu0 %v1194
  %v2089 = vpop.f32.mrf.mxu0
  %v2090 = vadd.f32 %v1330, %v2089
  %v2091 = vpop.f32.mrf.mxu0
  %2092 = vdwg.mxu0
  %2093 = vmatpush.bf16.msra.mxu0 %v1782
  %2094 = vmatpush.bf16.msra.mxu0 %v1778
  %2095 = vmatpush.bf16.msra.mxu0 %v1774
  %2096 = vmatpush.bf16.msra.mxu0 %v1770
  %2097 = vmatpush.bf16.msra.mxu0 %v1766
  %2098 = vmatpush.bf16.msra.mxu0 %v1762
  %2099 = vmatpush.bf16.msra.mxu0 %v1758
  %2100 = vmatpush.bf16.msra.mxu0 %v1754
  %2101 = vmatmul.bf16.gmra.mxu0 %v1195
  %v2102 = vpop.f32.mrf.mxu0
  %v2103 = vadd.f32 %v2090, %v2102
  %v2104 = vpop.f32.mrf.mxu0
  %2105 = vdwg.mxu0
  %2106 = vmatpush.bf16.msra.mxu0 %v1814
  %2107 = vmatpush.bf16.msra.mxu0 %v1810
  %2108 = vmatpush.bf16.msra.mxu0 %v1806
  %2109 = vmatpush.bf16.msra.mxu0 %v1802
  %2110 = vmatpush.bf16.msra.mxu0 %v1798
  %2111 = vmatpush.bf16.msra.mxu0 %v1794
  %2112 = vmatpush.bf16.msra.mxu0 %v1790
  %2113 = vmatpush.bf16.msra.mxu0 %v1786
  %2114 = vmatmul.bf16.gmra.mxu0 %v1196
  %v2115 = vpop.f32.mrf.mxu0
  %v2116 = vadd.f32 %v2103, %v2115
  %v2117 = vpop.f32.mrf.mxu0
  %2118 = vdwg.mxu0
  %2119 = vmatpush.bf16.msra.mxu0 %v1846
  %2120 = vmatpush.bf16.msra.mxu0 %v1842
  %2121 = vmatpush.bf16.msra.mxu0 %v1838
  %2122 = vmatpush.bf16.msra.mxu0 %v1834
  %2123 = vmatpush.bf16.msra.mxu0 %v1830
  %2124 = vmatpush.bf16.msra.mxu0 %v1826
  %2125 = vmatpush.bf16.msra.mxu0 %v1822
  %2126 = vmatpush.bf16.msra.mxu0 %v1818
  %2127 = vmatmul.bf16.gmra.mxu0 %v1197
  %v2128 = vpop.f32.mrf.mxu0
  %v2129 = vadd.f32 %v2116, %v2128
  %v2130 = vpop.f32.mrf.mxu0
  %2131 = vdwg.mxu0
  %2132 = vmatpush.bf16.msra.mxu0 %v1751
  %2133 = vmatpush.bf16.msra.mxu0 %v1747
  %2134 = vmatpush.bf16.msra.mxu0 %v1743
  %2135 = vmatpush.bf16.msra.mxu0 %v1739
  %2136 = vmatpush.bf16.msra.mxu0 %v1735
  %2137 = vmatpush.bf16.msra.mxu0 %v1731
  %2138 = vmatpush.bf16.msra.mxu0 %v1727
  %2139 = vmatpush.bf16.msra.mxu0 %v1723
  %2140 = vmatmul.bf16.gmra.mxu0 %v1194
  %v2141 = vpop.f32.mrf.mxu0
  %v2142 = vadd.f32 %v1331, %v2141
  %v2143 = vpop.f32.mrf.mxu0
  %2144 = vdwg.mxu0
  %2145 = vmatpush.bf16.msra.mxu0 %v1783
  %2146 = vmatpush.bf16.msra.mxu0 %v1779
  %2147 = vmatpush.bf16.msra.mxu0 %v1775
  %2148 = vmatpush.bf16.msra.mxu0 %v1771
  %2149 = vmatpush.bf16.msra.mxu0 %v1767
  %2150 = vmatpush.bf16.msra.mxu0 %v1763
  %2151 = vmatpush.bf16.msra.mxu0 %v1759
  %2152 = vmatpush.bf16.msra.mxu0 %v1755
  %2153 = vmatmul.bf16.gmra.mxu0 %v1195
  %v2154 = vpop.f32.mrf.mxu0
  %v2155 = vadd.f32 %v2142, %v2154
  %v2156 = vpop.f32.mrf.mxu0
  %2157 = vdwg.mxu0
  %2158 = vmatpush.bf16.msra.mxu0 %v1815
  %2159 = vmatpush.bf16.msra.mxu0 %v1811
  %2160 = vmatpush.bf16.msra.mxu0 %v1807
  %2161 = vmatpush.bf16.msra.mxu0 %v1803
  %2162 = vmatpush.bf16.msra.mxu0 %v1799
  %2163 = vmatpush.bf16.msra.mxu0 %v1795
  %2164 = vmatpush.bf16.msra.mxu0 %v1791
  %2165 = vmatpush.bf16.msra.mxu0 %v1787
  %2166 = vmatmul.bf16.gmra.mxu0 %v1196
  %v2167 = vpop.f32.mrf.mxu0
  %v2168 = vadd.f32 %v2155, %v2167
  %v2169 = vpop.f32.mrf.mxu0
  %2170 = vdwg.mxu0
  %2171 = vmatpush.bf16.msra.mxu0 %v1847
  %2172 = vmatpush.bf16.msra.mxu0 %v1843
  %2173 = vmatpush.bf16.msra.mxu0 %v1839
  %2174 = vmatpush.bf16.msra.mxu0 %v1835
  %2175 = vmatpush.bf16.msra.mxu0 %v1831
  %2176 = vmatpush.bf16.msra.mxu0 %v1827
  %2177 = vmatpush.bf16.msra.mxu0 %v1823
  %2178 = vmatpush.bf16.msra.mxu0 %v1819
  %2179 = vmatmul.bf16.gmra.mxu0 %v1197
  %v2180 = vpop.f32.mrf.mxu0
  %v2181 = vadd.f32 %v2168, %v2180
  %v2182 = vpop.f32.mrf.mxu0
  %2183 = vdwg.mxu0
  %v2184 = vtanh.pop %v2025
  %v2185 = vtanh.pop %v2077
  %v2186 = vtanh.pop %v2129
  %v2187 = vtanh.pop %v2181
  %v2188 = vpack.c.bf16 %v2184, %v2184
  %v2189 = vpack.c.bf16 %v2185, %v2185
  %v2190 = vpack.c.bf16 %v2186, %v2186
  %v2191 = vpack.c.bf16 %v2187, %v2187
  %v2192 = vld [vmem:[%s7] sm:$0xf]
  %v2193 = vld [vmem:[%s7 + $0x4] sm:$0xf]
  %v2194 = vld [vmem:[%s7 + $0x8] sm:$0xf]
  %v2195 = vld [vmem:[%s7 + $0xc] sm:$0xf]
  %v2196 = vld [vmem:[%s7 + $0x10] sm:$0xf]
  %v2197 = vld [vmem:[%s7 + $0x14] sm:$0xf]
  %v2198 = vld [vmem:[%s7 + $0x18] sm:$0xf]
  %v2199 = vld [vmem:[%s7 + $0x1c] sm:$0xf]
  %v2200 = vld [vmem:[%s7 + $0x20] sm:$0xf]
  %v2201 = vld [vmem:[%s7 + $0x24] sm:$0xf]
  %v2202 = vld [vmem:[%s7 + $0x28] sm:$0xf]
  %v2203 = vld [vmem:[%s7 + $0x2c] sm:$0xf]
  %v2204 = vld [vmem:[%s7 + $0x30] sm:$0xf]
  %v2205 = vld [vmem:[%s7 + $0x34] sm:$0xf]
  %v2206 = vld [vmem:[%s7 + $0x38] sm:$0xf]
  %v2207 = vld [vmem:[%s7 + $0x3c] sm:$0xf]
  %v2208 = vld [vmem:[%s7 + $0x40] sm:$0xf]
  %v2209 = vld [vmem:[%s7 + $0x44] sm:$0xf]
  %v2210 = vld [vmem:[%s7 + $0x48] sm:$0xf]
  %v2211 = vld [vmem:[%s7 + $0x4c] sm:$0xf]
  %v2212 = vld [vmem:[%s7 + $0x50] sm:$0xf]
  %v2213 = vld [vmem:[%s7 + $0x54] sm:$0xf]
  %v2214 = vld [vmem:[%s7 + $0x58] sm:$0xf]
  %v2215 = vld [vmem:[%s7 + $0x5c] sm:$0xf]
  %v2216 = vld [vmem:[%s7 + $0x60] sm:$0xf]
  %v2217 = vld [vmem:[%s7 + $0x64] sm:$0xf]
  %v2218 = vld [vmem:[%s7 + $0x68] sm:$0xf]
  %v2219 = vld [vmem:[%s7 + $0x6c] sm:$0xf]
  %v2220 = vld [vmem:[%s7 + $0x70] sm:$0xf]
  %v2221 = vld [vmem:[%s7 + $0x74] sm:$0xf]
  %v2222 = vld [vmem:[%s7 + $0x78] sm:$0xf]
  %v2223 = vld [vmem:[%s7 + $0x7c] sm:$0xf]
  %v2224 = vld [vmem:[%s7 + $0x80] sm:$0xf]
  %v2225 = vld [vmem:[%s7 + $0x84] sm:$0xf]
  %v2226 = vld [vmem:[%s7 + $0x88] sm:$0xf]
  %v2227 = vld [vmem:[%s7 + $0x8c] sm:$0xf]
  %v2228 = vld [vmem:[%s7 + $0x90] sm:$0xf]
  %v2229 = vld [vmem:[%s7 + $0x94] sm:$0xf]
  %v2230 = vld [vmem:[%s7 + $0x98] sm:$0xf]
  %v2231 = vld [vmem:[%s7 + $0x9c] sm:$0xf]
  %v2232 = vld [vmem:[%s7 + $0xa0] sm:$0xf]
  %v2233 = vld [vmem:[%s7 + $0xa4] sm:$0xf]
  %v2234 = vld [vmem:[%s7 + $0xa8] sm:$0xf]
  %v2235 = vld [vmem:[%s7 + $0xac] sm:$0xf]
  %v2236 = vld [vmem:[%s7 + $0xb0] sm:$0xf]
  %v2237 = vld [vmem:[%s7 + $0xb4] sm:$0xf]
  %v2238 = vld [vmem:[%s7 + $0xb8] sm:$0xf]
  %v2239 = vld [vmem:[%s7 + $0xbc] sm:$0xf]
  %v2240 = vld [vmem:[%s7 + $0xc0] sm:$0xf]
  %v2241 = vld [vmem:[%s7 + $0xc4] sm:$0xf]
  %v2242 = vld [vmem:[%s7 + $0xc8] sm:$0xf]
  %v2243 = vld [vmem:[%s7 + $0xcc] sm:$0xf]
  %v2244 = vld [vmem:[%s7 + $0xd0] sm:$0xf]
  %v2245 = vld [vmem:[%s7 + $0xd4] sm:$0xf]
  %v2246 = vld [vmem:[%s7 + $0xd8] sm:$0xf]
  %v2247 = vld [vmem:[%s7 + $0xdc] sm:$0xf]
  %v2248 = vld [vmem:[%s7 + $0xe0] sm:$0xf]
  %v2249 = vld [vmem:[%s7 + $0xe4] sm:$0xf]
  %v2250 = vld [vmem:[%s7 + $0xe8] sm:$0xf]
  %v2251 = vld [vmem:[%s7 + $0xec] sm:$0xf]
  %v2252 = vld [vmem:[%s7 + $0xf0] sm:$0xf]
  %v2253 = vld [vmem:[%s7 + $0xf4] sm:$0xf]
  %v2254 = vld [vmem:[%s7 + $0xf8] sm:$0xf]
  %v2255 = vld [vmem:[%s7 + $0xfc] sm:$0xf]
  %v2256 = vld [vmem:[%s8] sm:$0x1]
  %v2258 = vperm.slane %v2256, 0
  %v2324 = vunpack.c.l.b16 %v2192
  %v2325 = vunpack.c.l.b16 %v2193
  %v2326 = vunpack.c.l.b16 %v2194
  %v2327 = vunpack.c.l.b16 %v2195
  %v2328 = vunpack.c.l.b16 %v2196
  %v2329 = vunpack.c.l.b16 %v2197
  %v2330 = vunpack.c.l.b16 %v2198
  %v2331 = vunpack.c.l.b16 %v2199
  %v2332 = vunpack.c.l.b16 %v2200
  %v2333 = vunpack.c.l.b16 %v2201
  %v2334 = vunpack.c.l.b16 %v2202
  %v2335 = vunpack.c.l.b16 %v2203
  %v2336 = vunpack.c.l.b16 %v2204
  %v2337 = vunpack.c.l.b16 %v2205
  %v2338 = vunpack.c.l.b16 %v2206
  %v2339 = vunpack.c.l.b16 %v2207
  %v2340 = vunpack.c.l.b16 %v2208
  %v2341 = vunpack.c.l.b16 %v2209
  %v2342 = vunpack.c.l.b16 %v2210
  %v2343 = vunpack.c.l.b16 %v2211
  %v2344 = vunpack.c.l.b16 %v2212
  %v2345 = vunpack.c.l.b16 %v2213
  %v2346 = vunpack.c.l.b16 %v2214
  %v2347 = vunpack.c.l.b16 %v2215
  %v2348 = vunpack.c.l.b16 %v2216
  %v2349 = vunpack.c.l.b16 %v2217
  %v2350 = vunpack.c.l.b16 %v2218
  %v2351 = vunpack.c.l.b16 %v2219
  %v2352 = vunpack.c.l.b16 %v2220
  %v2353 = vunpack.c.l.b16 %v2221
  %v2354 = vunpack.c.l.b16 %v2222
  %v2355 = vunpack.c.l.b16 %v2223
  %v2356 = vunpack.c.l.b16 %v2224
  %v2357 = vunpack.c.l.b16 %v2225
  %v2358 = vunpack.c.l.b16 %v2226
  %v2359 = vunpack.c.l.b16 %v2227
  %v2360 = vunpack.c.l.b16 %v2228
  %v2361 = vunpack.c.l.b16 %v2229
  %v2362 = vunpack.c.l.b16 %v2230
  %v2363 = vunpack.c.l.b16 %v2231
  %v2364 = vunpack.c.l.b16 %v2232
  %v2365 = vunpack.c.l.b16 %v2233
  %v2366 = vunpack.c.l.b16 %v2234
  %v2367 = vunpack.c.l.b16 %v2235
  %v2368 = vunpack.c.l.b16 %v2236
  %v2369 = vunpack.c.l.b16 %v2237
  %v2370 = vunpack.c.l.b16 %v2238
  %v2371 = vunpack.c.l.b16 %v2239
  %v2372 = vunpack.c.l.b16 %v2240
  %v2373 = vunpack.c.l.b16 %v2241
  %v2374 = vunpack.c.l.b16 %v2242
  %v2375 = vunpack.c.l.b16 %v2243
  %v2376 = vunpack.c.l.b16 %v2244
  %v2377 = vunpack.c.l.b16 %v2245
  %v2378 = vunpack.c.l.b16 %v2246
  %v2379 = vunpack.c.l.b16 %v2247
  %v2380 = vunpack.c.l.b16 %v2248
  %v2381 = vunpack.c.l.b16 %v2249
  %v2382 = vunpack.c.l.b16 %v2250
  %v2383 = vunpack.c.l.b16 %v2251
  %v2384 = vunpack.c.l.b16 %v2252
  %v2385 = vunpack.c.l.b16 %v2253
  %v2386 = vunpack.c.l.b16 %v2254
  %v2387 = vunpack.c.l.b16 %v2255
  %v2388 = vpack.c.b16 %v2325, %v2324
  %v2389 = vpack.c.b16 %v2327, %v2326
  %v2390 = vpack.c.b16 %v2329, %v2328
  %v2391 = vpack.c.b16 %v2331, %v2330
  %v2392 = vpack.c.b16 %v2333, %v2332
  %v2393 = vpack.c.b16 %v2335, %v2334
  %v2394 = vpack.c.b16 %v2337, %v2336
  %v2395 = vpack.c.b16 %v2339, %v2338
  %v2396 = vpack.c.b16 %v2341, %v2340
  %v2397 = vpack.c.b16 %v2343, %v2342
  %v2398 = vpack.c.b16 %v2345, %v2344
  %v2399 = vpack.c.b16 %v2347, %v2346
  %v2400 = vpack.c.b16 %v2349, %v2348
  %v2401 = vpack.c.b16 %v2351, %v2350
  %v2402 = vpack.c.b16 %v2353, %v2352
  %v2403 = vpack.c.b16 %v2355, %v2354
  %v2404 = vpack.c.b16 %v2357, %v2356
  %v2405 = vpack.c.b16 %v2359, %v2358
  %v2406 = vpack.c.b16 %v2361, %v2360
  %v2407 = vpack.c.b16 %v2363, %v2362
  %v2408 = vpack.c.b16 %v2365, %v2364
  %v2409 = vpack.c.b16 %v2367, %v2366
  %v2410 = vpack.c.b16 %v2369, %v2368
  %v2411 = vpack.c.b16 %v2371, %v2370
  %v2412 = vpack.c.b16 %v2373, %v2372
  %v2413 = vpack.c.b16 %v2375, %v2374
  %v2414 = vpack.c.b16 %v2377, %v2376
  %v2415 = vpack.c.b16 %v2379, %v2378
  %v2416 = vpack.c.b16 %v2381, %v2380
  %v2417 = vpack.c.b16 %v2383, %v2382
  %v2418 = vpack.c.b16 %v2385, %v2384
  %v2419 = vpack.c.b16 %v2387, %v2386
  %2452 = vmatpush.bf16.msra.mxu0 %v2395
  %2453 = vmatpush.bf16.msra.mxu0 %v2394
  %2454 = vmatpush.bf16.msra.mxu0 %v2393
  %2455 = vmatpush.bf16.msra.mxu0 %v2392
  %2456 = vmatpush.bf16.msra.mxu0 %v2391
  %2457 = vmatpush.bf16.msra.mxu0 %v2390
  %2458 = vmatpush.bf16.msra.mxu0 %v2389
  %2459 = vmatpush.bf16.msra.mxu0 %v2388
  %2460 = vmatmul.bf16.gmra.mxu0 %v2188
  %v2461 = vpop.f32.mrf.mxu0
  %v2462 = vadd.f32 %v2258, %v2461
  %v2463 = vpop.f32.mrf.mxu0
  %2464 = vdwg.mxu0
  %2465 = vmatpush.bf16.msra.mxu0 %v2403
  %2466 = vmatpush.bf16.msra.mxu0 %v2402
  %2467 = vmatpush.bf16.msra.mxu0 %v2401
  %2468 = vmatpush.bf16.msra.mxu0 %v2400
  %2469 = vmatpush.bf16.msra.mxu0 %v2399
  %2470 = vmatpush.bf16.msra.mxu0 %v2398
  %2471 = vmatpush.bf16.msra.mxu0 %v2397
  %2472 = vmatpush.bf16.msra.mxu0 %v2396
  %2473 = vmatmul.bf16.gmra.mxu0 %v2189
  %v2474 = vpop.f32.mrf.mxu0
  %v2475 = vadd.f32 %v2462, %v2474
  %v2476 = vpop.f32.mrf.mxu0
  %2477 = vdwg.mxu0
  %2478 = vmatpush.bf16.msra.mxu0 %v2411
  %2479 = vmatpush.bf16.msra.mxu0 %v2410
  %2480 = vmatpush.bf16.msra.mxu0 %v2409
  %2481 = vmatpush.bf16.msra.mxu0 %v2408
  %2482 = vmatpush.bf16.msra.mxu0 %v2407
  %2483 = vmatpush.bf16.msra.mxu0 %v2406
  %2484 = vmatpush.bf16.msra.mxu0 %v2405
  %2485 = vmatpush.bf16.msra.mxu0 %v2404
  %2486 = vmatmul.bf16.gmra.mxu0 %v2190
  %v2487 = vpop.f32.mrf.mxu0
  %v2488 = vadd.f32 %v2475, %v2487
  %v2489 = vpop.f32.mrf.mxu0
  %2490 = vdwg.mxu0
  %2491 = vmatpush.bf16.msra.mxu0 %v2419
  %2492 = vmatpush.bf16.msra.mxu0 %v2418
  %2493 = vmatpush.bf16.msra.mxu0 %v2417
  %2494 = vmatpush.bf16.msra.mxu0 %v2416
  %2495 = vmatpush.bf16.msra.mxu0 %v2415
  %2496 = vmatpush.bf16.msra.mxu0 %v2414
  %2497 = vmatpush.bf16.msra.mxu0 %v2413
  %2498 = vmatpush.bf16.msra.mxu0 %v2412
  %2499 = vmatmul.bf16.gmra.mxu0 %v2191
  %v2500 = vpop.f32.mrf.mxu0
  %v2501 = vadd.f32 %v2488, %v2500
  %v2502 = vpop.f32.mrf.mxu0
  %2503 = vdwg.mxu0
  %v2504 = vxor.u32 %v2501, 2147483648
  %v2505 = vmul.f32 %v2504, 1.442695
  %v2506 = vpow.pop %v2505
  %v2507 = vadd.f32 %v2506, 1.0
  %v2508 = vrcp.pop %v2507
  %v2509 = vmul.f32 %v2507, %v2508
  %v2510 = vsub.f32 1.0, %v2509
  %v2511 = vmul.f32 %v2508, %v2510
  %v2512 = vadd.f32 %v2508, %v2511
  %vm2513 = vweird.f32 %v2507
  %vm2514 = vweird.f32 %v2508
  %vm2515 = vmor %vm2513, %vm2514
  %v2516 = vsel %vm2515, %v2508, %v2512
  %v2517 = vand.u32 2147483647, %v2507
  %vm2518 = vcmp.eq.f32.partialorder %v2517, 8.507059e+37
  %v2519 = vand.u32 %v2507, 2147483648
  %v2520 = vor.u32 1.1754944e-38, %v2519
  %v2521 = vsel %vm2518, %v2520, %v2516
  %v2522 = vmul.f32 1.0, %v2521
  %vm2523 = vcmask 7168
  %2524 = vst.msk [vmem:[%s9] sm:$0xff] %vm2523, %v2522
  // Predicated region
  $region38: #{discriminator_forward.1} parent=0 // pred_check
    _
  $region39: #{discriminator_forward.1} parent=0 // pred_check_branch
    %2526 = sbr.rel (0) target = $region41
  $region40: #{discriminator_forward.1} parent=0 // pred_region
    _
  $region41: #{discriminator_forward.1} parent=0 // pred_fallthru
    _
  // Predicated region
  $region42: #{discriminator_forward.1} parent=0 // pred_check
    _
  $region43: #{discriminator_forward.1} parent=0 // pred_check_branch
    %2528 = sbr.rel (0) target = $region45
  $region44: #{discriminator_forward.1} parent=0 // pred_region
    _
  $region45: #{discriminator_forward.1} parent=0 // pred_fallthru
    _

</llo_original>
